<compile_context>
chip_gen: v7x
topology: tpu7x:2x2x1
jax: 0.10.0
libtpu: 0.0.40
codegen_flags: <defaults>
</compile_context>

<pallas_src>
import math

import jax
import jax.numpy as jnp
from jax import lax
from jax.experimental import pallas as pl
from jax.experimental.pallas import tpu as pltpu

# ---------------------------------------------------------------------------
# model config (small, synthetic)
# ---------------------------------------------------------------------------
BATCH = 2
SEQ = 8
HIDDEN = 32
NUM_HEADS = 4
HEAD_DIM = HIDDEN // NUM_HEADS        # 8
INTERMEDIATE = 64
RMS_EPS = 1e-6
ROPE_THETA = 10000.0
NEG_BIAS = -1e30                      # additive mask value (exp underflows to 0)
MXU_DTYPE = jnp.bfloat16              # MXU operand dtype (f32 accumulation)


# ---------------------------------------------------------------------------
# Pallas kernel: one batch element (S, H) per grid step.
# ---------------------------------------------------------------------------
def decoder_layer_kernel(
    x_ref,      # (S, H)   hidden states for this batch element (f32)
    wq_ref,     # (H, H)   q projection, pre-scaled by 1/sqrt(hd)  (bf16)
    wk_ref,     # (H, H)   k projection                            (bf16)
    wv_ref,     # (H, H)   v projection                            (bf16)
    wo_ref,     # (H, H)   output projection                       (bf16)
    ln1_ref,    # (1, H)   input_layernorm weight                  (f32)
    ln2_ref,    # (1, H)   post_attention_layernorm weight         (f32)
    wg_ref,     # (H, I)   gate projection                         (bf16)
    wu_ref,     # (H, I)   up projection                           (bf16)
    wd_ref,     # (I, H)   down projection                         (bf16)
    cos_ref,    # (S, H)   RoPE cos, tiled per head                (f32)
    sin_ref,    # (S, H)   RoPE "signed sin" (rotate_half sign folded)
    rec_ref,    # (1, H)   recursion_encoding                      (f32)
    o_ref,      # (S, H)   output
):
    S, H = x_ref.shape
    nh, hd = NUM_HEADS, HEAD_DIM
    half = hd // 2

    x = x_ref[...].astype(jnp.float32)

    # ---------------- input RMSNorm (f32) ----------------
    var1 = jnp.mean(x * x, axis=-1, keepdims=True)
    x_n = x * lax.rsqrt(var1 + RMS_EPS) * ln1_ref[...]
    x_nb = x_n.astype(MXU_DTYPE)

    # ---------------- q / k / v projections (lane-0 aligned results) ------
    q = jnp.dot(x_nb, wq_ref[...], preferred_element_type=jnp.float32)
    k = jnp.dot(x_nb, wk_ref[...], preferred_element_type=jnp.float32)
    v = jnp.dot(x_nb, wv_ref[...], preferred_element_type=jnp.float32)

    # ---------------- full-width RoPE (2 XLU rolls + 1 VPU select) --------
    cos = cos_ref[...]
    sin_s = sin_ref[...]
    lane = lax.broadcasted_iota(jnp.int32, (S, H), 1)
    first_half = (lane % hd) < half

    def rope(t):
        # within each head block of hd lanes:
        #   first half lanes need t[j + half]  -> full-width roll by H - half
        #   second half lanes need t[j - half] -> full-width roll by  half
        rot = jnp.where(first_half,
                        pltpu.roll(t, H - half, axis=1),
                        pltpu.roll(t, half, axis=1))
        return t * cos + rot * sin_s

    q_b = rope(q).astype(MXU_DTYPE)
    k_b = rope(k).astype(MXU_DTYPE)
    v_b = v.astype(MXU_DTYPE)

    # ---------------- in-kernel causal mask (no dense HBM bias) -----------
    r_i = lax.broadcasted_iota(jnp.int32, (S, S), 0)
    c_i = lax.broadcasted_iota(jnp.int32, (S, S), 1)
    causal = c_i <= r_i

    # ---------------- per-head attention, accumulated through wo ----------
    attn_out = jnp.zeros((S, H), jnp.float32)
    for h in range(nh):
        lo, hi = h * hd, (h + 1) * hd
        q_h = q_b[:, lo:hi]
        k_h = k_b[:, lo:hi]
        v_h = v_b[:, lo:hi]

        s = lax.dot_general(q_h, k_h, (((1,), (1,)), ((), ())),
                            preferred_element_type=jnp.float32)   # (S, S)
        s = jnp.where(causal, s, NEG_BIAS)

        m = jnp.max(s, axis=-1, keepdims=True)
        p = jnp.exp(s - m)
        p = p / jnp.sum(p, axis=-1, keepdims=True)   # exact normalization

        ctx = jnp.dot(p.astype(MXU_DTYPE), v_h,
                      preferred_element_type=jnp.float32)          # (S, hd)
        # accumulate straight through the sublane-aligned wo row slice
        attn_out = attn_out + jnp.dot(ctx.astype(MXU_DTYPE),
                                      wo_ref[lo:hi, :],
                                      preferred_element_type=jnp.float32)

    x2 = x + attn_out                                              # residual

    # ---------------- post-attention RMSNorm + SwiGLU MLP -----------------
    var2 = jnp.mean(x2 * x2, axis=-1, keepdims=True)
    x2_n = x2 * lax.rsqrt(var2 + RMS_EPS) * ln2_ref[...]
    x2_nb = x2_n.astype(MXU_DTYPE)

    g = jnp.dot(x2_nb, wg_ref[...], preferred_element_type=jnp.float32)
    u = jnp.dot(x2_nb, wu_ref[...], preferred_element_type=jnp.float32)
    h_act = (g * jax.nn.sigmoid(g) * u).astype(MXU_DTYPE)          # SiLU(g)*u
    mlp_out = jnp.dot(h_act, wd_ref[...], preferred_element_type=jnp.float32)

    y = x2 + mlp_out                                               # residual

    # ---------------- recursion encoding (EncodedLlamaDecoderLayer) -------
    o_ref[...] = (y * rec_ref[...]).astype(o_ref.dtype)


# ---------------------------------------------------------------------------
# wrapper: weight prep (scale fold + bf16 cast), RoPE table tiling, grid=(B,).
# ---------------------------------------------------------------------------
@jax.jit
def encoded_llama_decoder_layer(hidden_states, params, cos, sin):
    B, S, H = hidden_states.shape
    I = INTERMEDIATE
    nh, hd = NUM_HEADS, HEAD_DIM
    half = hd // 2
    scale = 1.0 / math.sqrt(hd)

    # fold the attention scale into wq (RoPE is linear -> exact); bf16 weights
    wq = (params["wq"] * scale).astype(MXU_DTYPE)
    wk = params["wk"].astype(MXU_DTYPE)
    wv = params["wv"].astype(MXU_DTYPE)
    wo = params["wo"].astype(MXU_DTYPE)
    wg = params["wg"].astype(MXU_DTYPE)
    wu = params["wu"].astype(MXU_DTYPE)
    wd = params["wd"].astype(MXU_DTYPE)

    # full-width RoPE tables: tile per head, fold rotate_half's sign into sin
    cos_full = jnp.tile(cos, (1, nh)).astype(jnp.float32)               # (S, H)
    sin_signed = jnp.concatenate([-sin[:, :half], sin[:, half:]], axis=-1)
    sin_full = jnp.tile(sin_signed, (1, nh)).astype(jnp.float32)        # (S, H)

    out = pl.pallas_call(
        decoder_layer_kernel,
        out_shape=jax.ShapeDtypeStruct((B, S, H), hidden_states.dtype),
        grid=(B,),
        in_specs=[
            pl.BlockSpec((None, S, H), lambda b: (b, 0, 0)),   # x
            pl.BlockSpec((H, H), lambda b: (0, 0)),            # wq
            pl.BlockSpec((H, H), lambda b: (0, 0)),            # wk
            pl.BlockSpec((H, H), lambda b: (0, 0)),            # wv
            pl.BlockSpec((H, H), lambda b: (0, 0)),            # wo
            pl.BlockSpec((1, H), lambda b: (0, 0)),            # ln1
            pl.BlockSpec((1, H), lambda b: (0, 0)),            # ln2
            pl.BlockSpec((H, I), lambda b: (0, 0)),            # wg
            pl.BlockSpec((H, I), lambda b: (0, 0)),            # wu
            pl.BlockSpec((I, H), lambda b: (0, 0)),            # wd
            pl.BlockSpec((S, H), lambda b: (0, 0)),            # cos (tiled)
            pl.BlockSpec((S, H), lambda b: (0, 0)),            # sin (signed, tiled)
            pl.BlockSpec((1, H), lambda b: (0, 0)),            # recursion_encoding
        ],
        out_specs=pl.BlockSpec((None, S, H), lambda b: (b, 0, 0)),
        compiler_params=pltpu.CompilerParams(
            dimension_semantics=("parallel",),        # shard batch over TCs (v7x)
            vmem_limit_bytes=32 * 1024 * 1024),
    )(
        hidden_states, wq, wk, wv, wo,
        params["ln1"], params["ln2"], wg, wu, wd,
        cos_full, sin_full, params["rec"],
    )
    return out


# ---------------------------------------------------------------------------
# pure-JAX reference (standard formulation).  mxu_dtype lets the same code
# act as (a) the exact f32 module semantics and (b) a numerics-matched
# reference that rounds dot operands to the kernel's MXU dtype.
# ---------------------------------------------------------------------------
def reference(hidden_states, params, cos, sin, mxu_dtype=jnp.float32):
    f32 = jnp.float32
    x = hidden_states.astype(f32)
    B, S, H = x.shape
    nh, hd = NUM_HEADS, HEAD_DIM

    def rmsnorm(t, w):
        var = jnp.mean(t * t, axis=-1, keepdims=True)
        return t * lax.rsqrt(var + RMS_EPS) * w

    def mm(a, b):
        return jnp.dot(a.astype(mxu_dtype), b.astype(mxu_dtype),
                       preferred_element_type=f32)

    x_n = rmsnorm(x, params["ln1"][0])
    q = mm(x_n, params["wq"]).reshape(B, S, nh, hd)
    k = mm(x_n, params["wk"]).reshape(B, S, nh, hd)
    v = mm(x_n, params["wv"]).reshape(B, S, nh, hd)

    c = cos[None, :, None, :]
    s = sin[None, :, None, :]

    def rot(t):
        return jnp.concatenate([-t[..., hd // 2:], t[..., : hd // 2]], axis=-1)

    q = q * c + rot(q) * s
    k = k * c + rot(k) * s

    scores = jnp.einsum("bqhd,bkhd->bhqk",
                        q.astype(mxu_dtype), k.astype(mxu_dtype),
                        preferred_element_type=f32) / math.sqrt(hd)
    mask = jnp.tril(jnp.ones((S, S), bool))[None, None]
    scores = jnp.where(mask, scores, -1e9)
    p = jax.nn.softmax(scores, axis=-1)
    attn = jnp.einsum("bhqk,bkhd->bqhd",
                      p.astype(mxu_dtype), v.astype(mxu_dtype),
                      preferred_element_type=f32).reshape(B, S, H)
    x2 = x + mm(attn, params["wo"])

    x2_n = rmsnorm(x2, params["ln2"][0])
    g = mm(x2_n, params["wg"])
    u = mm(x2_n, params["wu"])
    y = x2 + mm(jax.nn.silu(g) * u, params["wd"])
    return y * params["rec"][0]


# ---------------------------------------------------------------------------
if __name__ == "__main__":
    key = jax.random.PRNGKey(0)
    keys = jax.random.split(key, 10)

    def init(k, shape, scale=0.05):
        return jax.random.normal(k, shape, jnp.float32) * scale

    params = {
        "wq": init(keys[0], (HIDDEN, HIDDEN)),
        "wk": init(keys[1], (HIDDEN, HIDDEN)),
        "wv": init(keys[2], (HIDDEN, HIDDEN)),
        "wo": init(keys[3], (HIDDEN, HIDDEN)),
        "wg": init(keys[4], (HIDDEN, INTERMEDIATE)),
        "wu": init(keys[5], (HIDDEN, INTERMEDIATE)),
        "wd": init(keys[6], (INTERMEDIATE, HIDDEN)),
        "ln1": jnp.ones((1, HIDDEN), jnp.float32),
        "ln2": jnp.ones((1, HIDDEN), jnp.float32),
        # recursion_encoding init = ones (nn.Parameter(torch.ones(H))), perturbed
        # so the scale actually does something in the check.
        "rec": (jnp.ones((1, HIDDEN), jnp.float32)
                + 0.1 * jax.random.normal(keys[7], (1, HIDDEN), jnp.float32)),
    }

    hidden_states = jax.random.normal(keys[8], (BATCH, SEQ, HIDDEN), jnp.float32)

    # rotary embedding tables (position_ids = arange(SEQ))
    pos = jnp.arange(SEQ, dtype=jnp.float32)
    inv_freq = 1.0 / (ROPE_THETA ** (
        jnp.arange(0, HEAD_DIM, 2, dtype=jnp.float32) / HEAD_DIM))
    freqs = pos[:, None] * inv_freq[None, :]
    emb = jnp.concatenate([freqs, freqs], axis=-1)      # (S, HEAD_DIM)
    cos = jnp.cos(emb)
    sin = jnp.sin(emb)

    out = encoded_llama_decoder_layer(hidden_states, params, cos, sin)
    out = jax.block_until_ready(out)
    assert out.shape == (BATCH, SEQ, HIDDEN)

    # 1) semantic check vs. the pure f32 module math (loose bound covers the
    #    bf16 MXU-operand rounding of the kernel).
    ref_f32 = reference(hidden_states, params, cos, sin, mxu_dtype=jnp.float32)
    assert jnp.allclose(out, ref_f32, atol=2e-2, rtol=2e-2), (
        float(jnp.max(jnp.abs(out - ref_f32))))

    # 2) tight numerics check vs. a reference that rounds dot operands to the
    #    same MXU dtype (catches RoPE / mask / fusion bugs).
    ref_mxu = reference(hidden_states, params, cos, sin, mxu_dtype=MXU_DTYPE)
    assert jnp.allclose(out, ref_mxu, atol=2e-3, rtol=2e-3), (
        float(jnp.max(jnp.abs(out - ref_mxu))))

    print("KERNEL_OK")
</pallas_src>

<mosaic_0001>
module attributes {stable_mosaic.version = 11 : i64} {
  func.func @decoder_layer_kernel(%arg0: i32, %arg1: memref<1x8x32xf32, #tpu.memory_space<vmem>>, %arg2: memref<32x32xbf16, #tpu.memory_space<vmem>>, %arg3: memref<32x32xbf16, #tpu.memory_space<vmem>>, %arg4: memref<32x32xbf16, #tpu.memory_space<vmem>>, %arg5: memref<32x32xbf16, #tpu.memory_space<vmem>>, %arg6: memref<1x32xf32, #tpu.memory_space<vmem>>, %arg7: memref<1x32xf32, #tpu.memory_space<vmem>>, %arg8: memref<32x64xbf16, #tpu.memory_space<vmem>>, %arg9: memref<32x64xbf16, #tpu.memory_space<vmem>>, %arg10: memref<64x32xbf16, #tpu.memory_space<vmem>>, %arg11: memref<8x32xf32, #tpu.memory_space<vmem>>, %arg12: memref<8x32xf32, #tpu.memory_space<vmem>>, %arg13: memref<1x32xf32, #tpu.memory_space<vmem>>, %arg14: memref<1x8x32xf32, #tpu.memory_space<vmem>>) attributes {dimension_semantics = [#tpu.dimension_semantics<parallel>], iteration_bounds = array<i64: 2>, scalar_prefetch = 0 : i64, scratch_operands = 0 : i64, tpu.core_type = #tpu.core_type<tc>, window_params = [{transform_indices = @transform_0, window_bounds = array<i64: 1, 8, 32>}, {pipeline_mode = #tpu.pipeline_mode<synchronous>, transform_indices = @transform_1, window_bounds = array<i64: 32, 32>}, {pipeline_mode = #tpu.pipeline_mode<synchronous>, transform_indices = @transform_2, window_bounds = array<i64: 32, 32>}, {pipeline_mode = #tpu.pipeline_mode<synchronous>, transform_indices = @transform_3, window_bounds = array<i64: 32, 32>}, {pipeline_mode = #tpu.pipeline_mode<synchronous>, transform_indices = @transform_4, window_bounds = array<i64: 32, 32>}, {pipeline_mode = #tpu.pipeline_mode<synchronous>, transform_indices = @transform_5, window_bounds = array<i64: 1, 32>}, {pipeline_mode = #tpu.pipeline_mode<synchronous>, transform_indices = @transform_6, window_bounds = array<i64: 1, 32>}, {pipeline_mode = #tpu.pipeline_mode<synchronous>, transform_indices = @transform_7, window_bounds = array<i64: 32, 64>}, {pipeline_mode = #tpu.pipeline_mode<synchronous>, transform_indices = @transform_8, window_bounds = array<i64: 32, 64>}, {pipeline_mode = #tpu.pipeline_mode<synchronous>, transform_indices = @transform_9, window_bounds = array<i64: 64, 32>}, {pipeline_mode = #tpu.pipeline_mode<synchronous>, transform_indices = @transform_10, window_bounds = array<i64: 8, 32>}, {pipeline_mode = #tpu.pipeline_mode<synchronous>, transform_indices = @transform_11, window_bounds = array<i64: 8, 32>}, {pipeline_mode = #tpu.pipeline_mode<synchronous>, transform_indices = @transform_12, window_bounds = array<i64: 1, 32>}, {transform_indices = @transform_13, window_bounds = array<i64: 1, 8, 32>}]} {
    %c0 = arith.constant 0 : index
    %c0_0 = arith.constant 0 : index
    %c0_1 = arith.constant 0 : index
    %0 = vector.load %arg1[%c0, %c0_0, %c0_1] : memref<1x8x32xf32, #tpu.memory_space<vmem>>, vector<1x8x32xf32>
    %1 = vector.shape_cast %0 : vector<1x8x32xf32> to vector<8x32xf32>
    %2 = arith.mulf %1, %1 : vector<8x32xf32>
    %cst = arith.constant dense<0.000000e+00> : vector<8xf32>
    %3 = vector.multi_reduction <add>, %2, %cst [1] : vector<8x32xf32> to vector<8xf32>
    %4 = vector.shape_cast %3 : vector<8xf32> to vector<8x1xf32>
    %cst_2 = arith.constant 3.200000e+01 : f32
    %5 = vector.broadcast %cst_2 : f32 to vector<8x1xf32>
    %6 = arith.divf %4, %5 : vector<8x1xf32>
    %cst_3 = arith.constant 9.99999997E-7 : f32
    %7 = vector.broadcast %cst_3 : f32 to vector<8x1xf32>
    %8 = arith.addf %6, %7 : vector<8x1xf32>
    %9 = math.rsqrt %8 : vector<8x1xf32>
    %10 = vector.broadcast %9 : vector<8x1xf32> to vector<8x32xf32>
    %11 = arith.mulf %1, %10 : vector<8x32xf32>
    %c0_4 = arith.constant 0 : index
    %c0_5 = arith.constant 0 : index
    %12 = vector.load %arg6[%c0_4, %c0_5] : memref<1x32xf32, #tpu.memory_space<vmem>>, vector<1x32xf32>
    %13 = vector.broadcast %12 : vector<1x32xf32> to vector<8x32xf32>
    %14 = arith.mulf %11, %13 : vector<8x32xf32>
    %15 = arith.truncf %14 : vector<8x32xf32> to vector<8x32xbf16>
    %c0_6 = arith.constant 0 : index
    %c0_7 = arith.constant 0 : index
    %16 = vector.load %arg2[%c0_6, %c0_7] : memref<32x32xbf16, #tpu.memory_space<vmem>>, vector<32x32xbf16>
    %cst_8 = arith.constant dense<0.000000e+00> : vector<8x32xf32>
    %17 = tpu.matmul %15, %16, %cst_8 {dimension_numbers = #tpu.dot_dimension_numbers<[1], [0], [0], [1], [0, 0, 1, 1], [], []>} : vector<8x32xbf16>, vector<32x32xbf16>, vector<8x32xf32> -> vector<8x32xf32>
    %c0_9 = arith.constant 0 : index
    %c0_10 = arith.constant 0 : index
    %18 = vector.load %arg3[%c0_9, %c0_10] : memref<32x32xbf16, #tpu.memory_space<vmem>>, vector<32x32xbf16>
    %cst_11 = arith.constant dense<0.000000e+00> : vector<8x32xf32>
    %19 = tpu.matmul %15, %18, %cst_11 {dimension_numbers = #tpu.dot_dimension_numbers<[1], [0], [0], [1], [0, 0, 1, 1], [], []>} : vector<8x32xbf16>, vector<32x32xbf16>, vector<8x32xf32> -> vector<8x32xf32>
    %c0_12 = arith.constant 0 : index
    %c0_13 = arith.constant 0 : index
    %20 = vector.load %arg4[%c0_12, %c0_13] : memref<32x32xbf16, #tpu.memory_space<vmem>>, vector<32x32xbf16>
    %cst_14 = arith.constant dense<0.000000e+00> : vector<8x32xf32>
    %21 = tpu.matmul %15, %20, %cst_14 {dimension_numbers = #tpu.dot_dimension_numbers<[1], [0], [0], [1], [0, 0, 1, 1], [], []>} : vector<8x32xbf16>, vector<32x32xbf16>, vector<8x32xf32> -> vector<8x32xf32>
    %c0_15 = arith.constant 0 : index
    %c0_16 = arith.constant 0 : index
    %22 = vector.load %arg11[%c0_15, %c0_16] : memref<8x32xf32, #tpu.memory_space<vmem>>, vector<8x32xf32>
    %c0_17 = arith.constant 0 : index
    %c0_18 = arith.constant 0 : index
    %23 = vector.load %arg12[%c0_17, %c0_18] : memref<8x32xf32, #tpu.memory_space<vmem>>, vector<8x32xf32>
    %24 = tpu.iota {dimensions = array<i32: 1>} : vector<8x32xi32>
    %c8_i32 = arith.constant 8 : i32
    %c0_i32 = arith.constant 0 : i32
    %25 = arith.cmpi eq, %c8_i32, %c0_i32 : i32
    %c1_i32 = arith.constant 1 : i32
    %26 = arith.select %25, %c1_i32, %c8_i32 : i32
    %27 = vector.broadcast %26 : i32 to vector<8x32xi32>
    %28 = arith.remsi %24, %27 : vector<8x32xi32>
    %c0_i32_19 = arith.constant 0 : i32
    %29 = vector.broadcast %c0_i32_19 : i32 to vector<8x32xi32>
    %30 = arith.cmpi ne, %28, %29 : vector<8x32xi32>
    %c0_i32_20 = arith.constant 0 : i32
    %31 = vector.broadcast %c0_i32_20 : i32 to vector<8x32xi32>
    %32 = arith.cmpi slt, %28, %31 : vector<8x32xi32>
    %c0_i32_21 = arith.constant 0 : i32
    %33 = arith.cmpi slt, %26, %c0_i32_21 : i32
    %34 = vector.broadcast %33 : i1 to vector<8x32xi1>
    %35 = vector.broadcast %34 : vector<8x32xi1> to vector<8x32xi1>
    %36 = arith.xori %32, %35 : vector<8x32xi1>
    %37 = arith.andi %36, %30 : vector<8x32xi1>
    %38 = vector.broadcast %26 : i32 to vector<8x32xi32>
    %39 = arith.addi %28, %38 : vector<8x32xi32>
    %40 = arith.select %37, %39, %28 : vector<8x32xi1>, vector<8x32xi32>
    %c4_i32 = arith.constant 4 : i32
    %41 = vector.broadcast %c4_i32 : i32 to vector<8x32xi32>
    %42 = arith.cmpi slt, %40, %41 : vector<8x32xi32>
    %c28_i32 = arith.constant 28 : i32
    %43 = tpu.dynamic_rotate %17 by %c28_i32 dim 1 : vector<8x32xf32>, i32 -> vector<8x32xf32>
    %c4_i32_22 = arith.constant 4 : i32
    %44 = tpu.dynamic_rotate %17 by %c4_i32_22 dim 1 : vector<8x32xf32>, i32 -> vector<8x32xf32>
    %45 = arith.select %42, %43, %44 : vector<8x32xi1>, vector<8x32xf32>
    %46 = arith.mulf %17, %22 : vector<8x32xf32>
    %47 = arith.mulf %45, %23 : vector<8x32xf32>
    %48 = arith.addf %46, %47 : vector<8x32xf32>
    %49 = arith.truncf %48 : vector<8x32xf32> to vector<8x32xbf16>
    %c28_i32_23 = arith.constant 28 : i32
    %50 = tpu.dynamic_rotate %19 by %c28_i32_23 dim 1 : vector<8x32xf32>, i32 -> vector<8x32xf32>
    %c4_i32_24 = arith.constant 4 : i32
    %51 = tpu.dynamic_rotate %19 by %c4_i32_24 dim 1 : vector<8x32xf32>, i32 -> vector<8x32xf32>
    %52 = arith.select %42, %50, %51 : vector<8x32xi1>, vector<8x32xf32>
    %53 = arith.mulf %19, %22 : vector<8x32xf32>
    %54 = arith.mulf %52, %23 : vector<8x32xf32>
    %55 = arith.addf %53, %54 : vector<8x32xf32>
    %56 = arith.truncf %55 : vector<8x32xf32> to vector<8x32xbf16>
    %57 = arith.truncf %21 : vector<8x32xf32> to vector<8x32xbf16>
    %58 = tpu.iota {dimensions = array<i32: 0>} : vector<8x8xi32>
    %59 = tpu.iota {dimensions = array<i32: 1>} : vector<8x8xi32>
    %60 = arith.cmpi sle, %59, %58 : vector<8x8xi32>
    %cst_25 = arith.constant 0.000000e+00 : f32
    %61 = vector.broadcast %cst_25 : f32 to vector<8x32xf32>
    %62 = vector.extract_strided_slice %49 {offsets = [0, 0], sizes = [8, 8], strides = [1, 1]} : vector<8x32xbf16> to vector<8x8xbf16>
    %63 = vector.extract_strided_slice %56 {offsets = [0, 0], sizes = [8, 8], strides = [1, 1]} : vector<8x32xbf16> to vector<8x8xbf16>
    %64 = vector.extract_strided_slice %57 {offsets = [0, 0], sizes = [8, 8], strides = [1, 1]} : vector<8x32xbf16> to vector<8x8xbf16>
    %cst_26 = arith.constant dense<0.000000e+00> : vector<8x8xf32>
    %65 = tpu.matmul %62, %63, %cst_26 {dimension_numbers = #tpu.dot_dimension_numbers<[1], [1], [0], [0], [0, 0, 1, 0], [], []>} : vector<8x8xbf16>, vector<8x8xbf16>, vector<8x8xf32> -> vector<8x8xf32>
    %cst_27 = arith.constant -1.000000e+30 : f32
    %66 = vector.broadcast %cst_27 : f32 to vector<8x8xf32>
    %67 = arith.select %60, %65, %66 : vector<8x8xi1>, vector<8x8xf32>
    %cst_28 = arith.constant dense<0xFF800000> : vector<8xf32>
    %68 = vector.multi_reduction <maximumf>, %67, %cst_28 [1] : vector<8x8xf32> to vector<8xf32>
    %69 = vector.shape_cast %68 : vector<8xf32> to vector<8x1xf32>
    %70 = vector.broadcast %69 : vector<8x1xf32> to vector<8x8xf32>
    %71 = arith.subf %67, %70 : vector<8x8xf32>
    %72 = math.exp %71 : vector<8x8xf32>
    %cst_29 = arith.constant dense<0.000000e+00> : vector<8xf32>
    %73 = vector.multi_reduction <add>, %72, %cst_29 [1] : vector<8x8xf32> to vector<8xf32>
    %74 = vector.shape_cast %73 : vector<8xf32> to vector<8x1xf32>
    %75 = vector.broadcast %74 : vector<8x1xf32> to vector<8x8xf32>
    %76 = arith.divf %72, %75 : vector<8x8xf32>
    %77 = arith.truncf %76 : vector<8x8xf32> to vector<8x8xbf16>
    %cst_30 = arith.constant dense<0.000000e+00> : vector<8x8xf32>
    %78 = tpu.matmul %77, %64, %cst_30 {dimension_numbers = #tpu.dot_dimension_numbers<[1], [0], [0], [1], [0, 0, 1, 1], [], []>} : vector<8x8xbf16>, vector<8x8xbf16>, vector<8x8xf32> -> vector<8x8xf32>
    %79 = arith.truncf %78 : vector<8x8xf32> to vector<8x8xbf16>
    %c0_31 = arith.constant 0 : index
    %c0_32 = arith.constant 0 : index
    %80 = vector.load %arg5[%c0_31, %c0_32] : memref<32x32xbf16, #tpu.memory_space<vmem>>, vector<8x32xbf16>
    %cst_33 = arith.constant dense<0.000000e+00> : vector<8x32xf32>
    %81 = tpu.matmul %79, %80, %cst_33 {dimension_numbers = #tpu.dot_dimension_numbers<[1], [0], [0], [1], [0, 0, 1, 1], [], []>} : vector<8x8xbf16>, vector<8x32xbf16>, vector<8x32xf32> -> vector<8x32xf32>
    %82 = arith.addf %61, %81 : vector<8x32xf32>
    %83 = vector.extract_strided_slice %49 {offsets = [0, 8], sizes = [8, 8], strides = [1, 1]} : vector<8x32xbf16> to vector<8x8xbf16>
    %84 = vector.extract_strided_slice %56 {offsets = [0, 8], sizes = [8, 8], strides = [1, 1]} : vector<8x32xbf16> to vector<8x8xbf16>
    %85 = vector.extract_strided_slice %57 {offsets = [0, 8], sizes = [8, 8], strides = [1, 1]} : vector<8x32xbf16> to vector<8x8xbf16>
    %cst_34 = arith.constant dense<0.000000e+00> : vector<8x8xf32>
    %86 = tpu.matmul %83, %84, %cst_34 {dimension_numbers = #tpu.dot_dimension_numbers<[1], [1], [0], [0], [0, 0, 1, 0], [], []>} : vector<8x8xbf16>, vector<8x8xbf16>, vector<8x8xf32> -> vector<8x8xf32>
    %cst_35 = arith.constant -1.000000e+30 : f32
    %87 = vector.broadcast %cst_35 : f32 to vector<8x8xf32>
    %88 = arith.select %60, %86, %87 : vector<8x8xi1>, vector<8x8xf32>
    %cst_36 = arith.constant dense<0xFF800000> : vector<8xf32>
    %89 = vector.multi_reduction <maximumf>, %88, %cst_36 [1] : vector<8x8xf32> to vector<8xf32>
    %90 = vector.shape_cast %89 : vector<8xf32> to vector<8x1xf32>
    %91 = vector.broadcast %90 : vector<8x1xf32> to vector<8x8xf32>
    %92 = arith.subf %88, %91 : vector<8x8xf32>
    %93 = math.exp %92 : vector<8x8xf32>
    %cst_37 = arith.constant dense<0.000000e+00> : vector<8xf32>
    %94 = vector.multi_reduction <add>, %93, %cst_37 [1] : vector<8x8xf32> to vector<8xf32>
    %95 = vector.shape_cast %94 : vector<8xf32> to vector<8x1xf32>
    %96 = vector.broadcast %95 : vector<8x1xf32> to vector<8x8xf32>
    %97 = arith.divf %93, %96 : vector<8x8xf32>
    %98 = arith.truncf %97 : vector<8x8xf32> to vector<8x8xbf16>
    %cst_38 = arith.constant dense<0.000000e+00> : vector<8x8xf32>
    %99 = tpu.matmul %98, %85, %cst_38 {dimension_numbers = #tpu.dot_dimension_numbers<[1], [0], [0], [1], [0, 0, 1, 1], [], []>} : vector<8x8xbf16>, vector<8x8xbf16>, vector<8x8xf32> -> vector<8x8xf32>
    %100 = arith.truncf %99 : vector<8x8xf32> to vector<8x8xbf16>
    %c8 = arith.constant 8 : index
    %c0_39 = arith.constant 0 : index
    %101 = vector.load %arg5[%c8, %c0_39] : memref<32x32xbf16, #tpu.memory_space<vmem>>, vector<8x32xbf16>
    %cst_40 = arith.constant dense<0.000000e+00> : vector<8x32xf32>
    %102 = tpu.matmul %100, %101, %cst_40 {dimension_numbers = #tpu.dot_dimension_numbers<[1], [0], [0], [1], [0, 0, 1, 1], [], []>} : vector<8x8xbf16>, vector<8x32xbf16>, vector<8x32xf32> -> vector<8x32xf32>
    %103 = arith.addf %82, %102 : vector<8x32xf32>
    %104 = vector.extract_strided_slice %49 {offsets = [0, 16], sizes = [8, 8], strides = [1, 1]} : vector<8x32xbf16> to vector<8x8xbf16>
    %105 = vector.extract_strided_slice %56 {offsets = [0, 16], sizes = [8, 8], strides = [1, 1]} : vector<8x32xbf16> to vector<8x8xbf16>
    %106 = vector.extract_strided_slice %57 {offsets = [0, 16], sizes = [8, 8], strides = [1, 1]} : vector<8x32xbf16> to vector<8x8xbf16>
    %cst_41 = arith.constant dense<0.000000e+00> : vector<8x8xf32>
    %107 = tpu.matmul %104, %105, %cst_41 {dimension_numbers = #tpu.dot_dimension_numbers<[1], [1], [0], [0], [0, 0, 1, 0], [], []>} : vector<8x8xbf16>, vector<8x8xbf16>, vector<8x8xf32> -> vector<8x8xf32>
    %cst_42 = arith.constant -1.000000e+30 : f32
    %108 = vector.broadcast %cst_42 : f32 to vector<8x8xf32>
    %109 = arith.select %60, %107, %108 : vector<8x8xi1>, vector<8x8xf32>
    %cst_43 = arith.constant dense<0xFF800000> : vector<8xf32>
    %110 = vector.multi_reduction <maximumf>, %109, %cst_43 [1] : vector<8x8xf32> to vector<8xf32>
    %111 = vector.shape_cast %110 : vector<8xf32> to vector<8x1xf32>
    %112 = vector.broadcast %111 : vector<8x1xf32> to vector<8x8xf32>
    %113 = arith.subf %109, %112 : vector<8x8xf32>
    %114 = math.exp %113 : vector<8x8xf32>
    %cst_44 = arith.constant dense<0.000000e+00> : vector<8xf32>
    %115 = vector.multi_reduction <add>, %114, %cst_44 [1] : vector<8x8xf32> to vector<8xf32>
    %116 = vector.shape_cast %115 : vector<8xf32> to vector<8x1xf32>
    %117 = vector.broadcast %116 : vector<8x1xf32> to vector<8x8xf32>
    %118 = arith.divf %114, %117 : vector<8x8xf32>
    %119 = arith.truncf %118 : vector<8x8xf32> to vector<8x8xbf16>
    %cst_45 = arith.constant dense<0.000000e+00> : vector<8x8xf32>
    %120 = tpu.matmul %119, %106, %cst_45 {dimension_numbers = #tpu.dot_dimension_numbers<[1], [0], [0], [1], [0, 0, 1, 1], [], []>} : vector<8x8xbf16>, vector<8x8xbf16>, vector<8x8xf32> -> vector<8x8xf32>
    %121 = arith.truncf %120 : vector<8x8xf32> to vector<8x8xbf16>
    %c16 = arith.constant 16 : index
    %c0_46 = arith.constant 0 : index
    %122 = vector.load %arg5[%c16, %c0_46] : memref<32x32xbf16, #tpu.memory_space<vmem>>, vector<8x32xbf16>
    %cst_47 = arith.constant dense<0.000000e+00> : vector<8x32xf32>
    %123 = tpu.matmul %121, %122, %cst_47 {dimension_numbers = #tpu.dot_dimension_numbers<[1], [0], [0], [1], [0, 0, 1, 1], [], []>} : vector<8x8xbf16>, vector<8x32xbf16>, vector<8x32xf32> -> vector<8x32xf32>
    %124 = arith.addf %103, %123 : vector<8x32xf32>
    %125 = vector.extract_strided_slice %49 {offsets = [0, 24], sizes = [8, 8], strides = [1, 1]} : vector<8x32xbf16> to vector<8x8xbf16>
    %126 = vector.extract_strided_slice %56 {offsets = [0, 24], sizes = [8, 8], strides = [1, 1]} : vector<8x32xbf16> to vector<8x8xbf16>
    %127 = vector.extract_strided_slice %57 {offsets = [0, 24], sizes = [8, 8], strides = [1, 1]} : vector<8x32xbf16> to vector<8x8xbf16>
    %cst_48 = arith.constant dense<0.000000e+00> : vector<8x8xf32>
    %128 = tpu.matmul %125, %126, %cst_48 {dimension_numbers = #tpu.dot_dimension_numbers<[1], [1], [0], [0], [0, 0, 1, 0], [], []>} : vector<8x8xbf16>, vector<8x8xbf16>, vector<8x8xf32> -> vector<8x8xf32>
    %cst_49 = arith.constant -1.000000e+30 : f32
    %129 = vector.broadcast %cst_49 : f32 to vector<8x8xf32>
    %130 = arith.select %60, %128, %129 : vector<8x8xi1>, vector<8x8xf32>
    %cst_50 = arith.constant dense<0xFF800000> : vector<8xf32>
    %131 = vector.multi_reduction <maximumf>, %130, %cst_50 [1] : vector<8x8xf32> to vector<8xf32>
    %132 = vector.shape_cast %131 : vector<8xf32> to vector<8x1xf32>
    %133 = vector.broadcast %132 : vector<8x1xf32> to vector<8x8xf32>
    %134 = arith.subf %130, %133 : vector<8x8xf32>
    %135 = math.exp %134 : vector<8x8xf32>
    %cst_51 = arith.constant dense<0.000000e+00> : vector<8xf32>
    %136 = vector.multi_reduction <add>, %135, %cst_51 [1] : vector<8x8xf32> to vector<8xf32>
    %137 = vector.shape_cast %136 : vector<8xf32> to vector<8x1xf32>
    %138 = vector.broadcast %137 : vector<8x1xf32> to vector<8x8xf32>
    %139 = arith.divf %135, %138 : vector<8x8xf32>
    %140 = arith.truncf %139 : vector<8x8xf32> to vector<8x8xbf16>
    %cst_52 = arith.constant dense<0.000000e+00> : vector<8x8xf32>
    %141 = tpu.matmul %140, %127, %cst_52 {dimension_numbers = #tpu.dot_dimension_numbers<[1], [0], [0], [1], [0, 0, 1, 1], [], []>} : vector<8x8xbf16>, vector<8x8xbf16>, vector<8x8xf32> -> vector<8x8xf32>
    %142 = arith.truncf %141 : vector<8x8xf32> to vector<8x8xbf16>
    %c24 = arith.constant 24 : index
    %c0_53 = arith.constant 0 : index
    %143 = vector.load %arg5[%c24, %c0_53] : memref<32x32xbf16, #tpu.memory_space<vmem>>, vector<8x32xbf16>
    %cst_54 = arith.constant dense<0.000000e+00> : vector<8x32xf32>
    %144 = tpu.matmul %142, %143, %cst_54 {dimension_numbers = #tpu.dot_dimension_numbers<[1], [0], [0], [1], [0, 0, 1, 1], [], []>} : vector<8x8xbf16>, vector<8x32xbf16>, vector<8x32xf32> -> vector<8x32xf32>
    %145 = arith.addf %124, %144 : vector<8x32xf32>
    %146 = arith.addf %1, %145 : vector<8x32xf32>
    %147 = arith.mulf %146, %146 : vector<8x32xf32>
    %cst_55 = arith.constant dense<0.000000e+00> : vector<8xf32>
    %148 = vector.multi_reduction <add>, %147, %cst_55 [1] : vector<8x32xf32> to vector<8xf32>
    %149 = vector.shape_cast %148 : vector<8xf32> to vector<8x1xf32>
    %cst_56 = arith.constant 3.200000e+01 : f32
    %150 = vector.broadcast %cst_56 : f32 to vector<8x1xf32>
    %151 = arith.divf %149, %150 : vector<8x1xf32>
    %cst_57 = arith.constant 9.99999997E-7 : f32
    %152 = vector.broadcast %cst_57 : f32 to vector<8x1xf32>
    %153 = arith.addf %151, %152 : vector<8x1xf32>
    %154 = math.rsqrt %153 : vector<8x1xf32>
    %155 = vector.broadcast %154 : vector<8x1xf32> to vector<8x32xf32>
    %156 = arith.mulf %146, %155 : vector<8x32xf32>
    %c0_58 = arith.constant 0 : index
    %c0_59 = arith.constant 0 : index
    %157 = vector.load %arg7[%c0_58, %c0_59] : memref<1x32xf32, #tpu.memory_space<vmem>>, vector<1x32xf32>
    %158 = vector.broadcast %157 : vector<1x32xf32> to vector<8x32xf32>
    %159 = arith.mulf %156, %158 : vector<8x32xf32>
    %160 = arith.truncf %159 : vector<8x32xf32> to vector<8x32xbf16>
    %c0_60 = arith.constant 0 : index
    %c0_61 = arith.constant 0 : index
    %161 = vector.load %arg8[%c0_60, %c0_61] : memref<32x64xbf16, #tpu.memory_space<vmem>>, vector<32x64xbf16>
    %cst_62 = arith.constant dense<0.000000e+00> : vector<8x64xf32>
    %162 = tpu.matmul %160, %161, %cst_62 {dimension_numbers = #tpu.dot_dimension_numbers<[1], [0], [0], [1], [0, 0, 1, 1], [], []>} : vector<8x32xbf16>, vector<32x64xbf16>, vector<8x64xf32> -> vector<8x64xf32>
    %c0_63 = arith.constant 0 : index
    %c0_64 = arith.constant 0 : index
    %163 = vector.load %arg9[%c0_63, %c0_64] : memref<32x64xbf16, #tpu.memory_space<vmem>>, vector<32x64xbf16>
    %cst_65 = arith.constant dense<0.000000e+00> : vector<8x64xf32>
    %164 = tpu.matmul %160, %163, %cst_65 {dimension_numbers = #tpu.dot_dimension_numbers<[1], [0], [0], [1], [0, 0, 1, 1], [], []>} : vector<8x32xbf16>, vector<32x64xbf16>, vector<8x64xf32> -> vector<8x64xf32>
    %165 = arith.negf %162 : vector<8x64xf32>
    %166 = math.exp %165 : vector<8x64xf32>
    %cst_66 = arith.constant 1.000000e+00 : f32
    %167 = vector.broadcast %cst_66 : f32 to vector<8x64xf32>
    %168 = arith.addf %167, %166 : vector<8x64xf32>
    %169 = arith.divf %167, %168 : vector<8x64xf32>
    %170 = arith.mulf %162, %169 : vector<8x64xf32>
    %171 = arith.mulf %170, %164 : vector<8x64xf32>
    %172 = arith.truncf %171 : vector<8x64xf32> to vector<8x64xbf16>
    %c0_67 = arith.constant 0 : index
    %c0_68 = arith.constant 0 : index
    %173 = vector.load %arg10[%c0_67, %c0_68] : memref<64x32xbf16, #tpu.memory_space<vmem>>, vector<64x32xbf16>
    %cst_69 = arith.constant dense<0.000000e+00> : vector<8x32xf32>
    %174 = tpu.matmul %172, %173, %cst_69 {dimension_numbers = #tpu.dot_dimension_numbers<[1], [0], [0], [1], [0, 0, 1, 1], [], []>} : vector<8x64xbf16>, vector<64x32xbf16>, vector<8x32xf32> -> vector<8x32xf32>
    %175 = arith.addf %146, %174 : vector<8x32xf32>
    %c0_70 = arith.constant 0 : index
    %c0_71 = arith.constant 0 : index
    %176 = vector.load %arg13[%c0_70, %c0_71] : memref<1x32xf32, #tpu.memory_space<vmem>>, vector<1x32xf32>
    %177 = vector.broadcast %176 : vector<1x32xf32> to vector<8x32xf32>
    %178 = arith.mulf %175, %177 : vector<8x32xf32>
    %c0_72 = arith.constant 0 : index
    %c0_73 = arith.constant 0 : index
    %c0_74 = arith.constant 0 : index
    %179 = vector.load %arg14[%c0_72, %c0_73, %c0_74] : memref<1x8x32xf32, #tpu.memory_space<vmem>>, vector<1x8x32xf32>
    %180 = vector.shape_cast %179 : vector<1x8x32xf32> to vector<8x32xf32>
    %181 = vector.shape_cast %178 : vector<8x32xf32> to vector<1x8x32xf32>
    tpu.vector_store %arg14[%c0_72, %c0_73, %c0_74], %181 {strides = array<i32>} : memref<1x8x32xf32, #tpu.memory_space<vmem>>, vector<1x8x32xf32>,
    return
  }
  func.func @transform_0(%arg0: i32) -> (i32, i32, i32) {
    %c0_i32 = arith.constant 0 : i32
    %c0_i32_0 = arith.constant 0 : i32
    %c0_i32_1 = arith.constant 0 : i32
    return %arg0, %c0_i32, %c0_i32_0 : i32, i32, i32
  }
  func.func @transform_1(%arg0: i32) -> (i32, i32) {
    %c0_i32 = arith.constant 0 : i32
    %c0_i32_0 = arith.constant 0 : i32
    %c0_i32_1 = arith.constant 0 : i32
    return %c0_i32, %c0_i32_0 : i32, i32
  }
  func.func @transform_2(%arg0: i32) -> (i32, i32) {
    %c0_i32 = arith.constant 0 : i32
    %c0_i32_0 = arith.constant 0 : i32
    %c0_i32_1 = arith.constant 0 : i32
    return %c0_i32, %c0_i32_0 : i32, i32
  }
  func.func @transform_3(%arg0: i32) -> (i32, i32) {
    %c0_i32 = arith.constant 0 : i32
    %c0_i32_0 = arith.constant 0 : i32
    %c0_i32_1 = arith.constant 0 : i32
    return %c0_i32, %c0_i32_0 : i32, i32
  }
  func.func @transform_4(%arg0: i32) -> (i32, i32) {
    %c0_i32 = arith.constant 0 : i32
    %c0_i32_0 = arith.constant 0 : i32
    %c0_i32_1 = arith.constant 0 : i32
    return %c0_i32, %c0_i32_0 : i32, i32
  }
  func.func @transform_5(%arg0: i32) -> (i32, i32) {
    %c0_i32 = arith.constant 0 : i32
    %c0_i32_0 = arith.constant 0 : i32
    %c0_i32_1 = arith.constant 0 : i32
    return %c0_i32, %c0_i32_0 : i32, i32
  }
  func.func @transform_6(%arg0: i32) -> (i32, i32) {
    %c0_i32 = arith.constant 0 : i32
    %c0_i32_0 = arith.constant 0 : i32
    %c0_i32_1 = arith.constant 0 : i32
    return %c0_i32, %c0_i32_0 : i32, i32
  }
  func.func @transform_7(%arg0: i32) -> (i32, i32) {
    %c0_i32 = arith.constant 0 : i32
    %c0_i32_0 = arith.constant 0 : i32
    %c0_i32_1 = arith.constant 0 : i32
    return %c0_i32, %c0_i32_0 : i32, i32
  }
  func.func @transform_8(%arg0: i32) -> (i32, i32) {
    %c0_i32 = arith.constant 0 : i32
    %c0_i32_0 = arith.constant 0 : i32
    %c0_i32_1 = arith.constant 0 : i32
    return %c0_i32, %c0_i32_0 : i32, i32
  }
  func.func @transform_9(%arg0: i32) -> (i32, i32) {
    %c0_i32 = arith.constant 0 : i32
    %c0_i32_0 = arith.constant 0 : i32
    %c0_i32_1 = arith.constant 0 : i32
    return %c0_i32, %c0_i32_0 : i32, i32
  }
  func.func @transform_10(%arg0: i32) -> (i32, i32) {
    %c0_i32 = arith.constant 0 : i32
    %c0_i32_0 = arith.constant 0 : i32
    %c0_i32_1 = arith.constant 0 : i32
    return %c0_i32, %c0_i32_0 : i32, i32
  }
  func.func @transform_11(%arg0: i32) -> (i32, i32) {
    %c0_i32 = arith.constant 0 : i32
    %c0_i32_0 = arith.constant 0 : i32
    %c0_i32_1 = arith.constant 0 : i32
    return %c0_i32, %c0_i32_0 : i32, i32
  }
  func.func @transform_12(%arg0: i32) -> (i32, i32) {
    %c0_i32 = arith.constant 0 : i32
    %c0_i32_0 = arith.constant 0 : i32
    %c0_i32_1 = arith.constant 0 : i32
    return %c0_i32, %c0_i32_0 : i32, i32
  }
  func.func @transform_13(%arg0: i32) -> (i32, i32, i32) {
    %c0_i32 = arith.constant 0 : i32
    %c0_i32_0 = arith.constant 0 : i32
    %c0_i32_1 = arith.constant 0 : i32
    return %arg0, %c0_i32, %c0_i32_0 : i32, i32, i32
  }
}

</mosaic_0001>

<llo_original>
// kernel: tile.19
$region0: #{tile.19}
  %s0 = inlined_call_operand.vmem [shape: f32[8,4,8], index: 0, kind: input, shape index: {}]
  %s1 = inlined_call_operand.vmem [shape: f32[8,32], index: 1, kind: output, shape index: {}]
  $region1: #{tile.19} parent=0
    #allocation0 [shape = 'u8[32768]{0}', space=vmem, size = 0x8000, scoped, tag = 'scoped mem for input reshape']
    %s3 = sshllo.u32 0, 4
    %s4 = smul.addr 4, 7
    %s5 = scalar_lea.vmem %s0, %s4
    %v6 = vld [vmem:[%s5] sm:%s3]
    %s7 = scalar_lea.vmem [#allocation0], 56
    %8 = vst [vmem:[%s7] sm:%s3] %v6
    %s9 = smul.addr 4, 6
    %s10 = scalar_lea.vmem %s0, %s9
    %v11 = vld [vmem:[%s10] sm:%s3]
    %s12 = scalar_lea.vmem [#allocation0], 48
    %13 = vst [vmem:[%s12] sm:%s3] %v11
    %s14 = smul.addr 4, 5
    %s15 = scalar_lea.vmem %s0, %s14
    %v16 = vld [vmem:[%s15] sm:%s3]
    %s17 = scalar_lea.vmem [#allocation0], 40
    %18 = vst [vmem:[%s17] sm:%s3] %v16
    %s19 = smul.addr 4, 4
    %s20 = scalar_lea.vmem %s0, %s19
    %v21 = vld [vmem:[%s20] sm:%s3]
    %s22 = scalar_lea.vmem [#allocation0], 32
    %23 = vst [vmem:[%s22] sm:%s3] %v21
    %s24 = smul.addr 4, 3
    %s25 = scalar_lea.vmem %s0, %s24
    %v26 = vld [vmem:[%s25] sm:%s3]
    %s27 = scalar_lea.vmem [#allocation0], 24
    %28 = vst [vmem:[%s27] sm:%s3] %v26
    %s29 = smul.addr 4, 2
    %s30 = scalar_lea.vmem %s0, %s29
    %v31 = vld [vmem:[%s30] sm:%s3]
    %s32 = scalar_lea.vmem [#allocation0], 16
    %33 = vst [vmem:[%s32] sm:%s3] %v31
    %s34 = scalar_lea.vmem %s0, 4
    %v35 = vld [vmem:[%s34] sm:%s3]
    %s36 = scalar_lea.vmem [#allocation0], 8
    %37 = vst [vmem:[%s36] sm:%s3] %v35
    %v38 = vld [vmem:[%s0] sm:%s3]
    %39 = vst [vmem:[#allocation0] sm:%s3] %v38
    %v40 = vld [vmem:[#allocation0] ss:$8 sm:$0xf]
    %v41 = vld [vmem:[#allocation0] ss:$8 sm:$0xf0]
    %vm42 = vcmask 1047556
    %v43 = vsel %vm42, %v41, %v40
    %vm44 = vcmask 64512
    %45 = vst.msk [vmem:[%s1] sm:$0xff] %vm44, %v43
    %s46 = scalar_lea.vmem [#allocation0], 3
    %v47 = vld [vmem:[%s46] ss:$8 sm:$0xf]
    %s48 = scalar_lea.vmem [#allocation0], 3
    %v49 = vld [vmem:[%s48] ss:$8 sm:$0xf0]
    %vm50 = vcmask 1047556
    %v51 = vsel %vm50, %v49, %v47
    %52 = vrot.lane.b32.xlu0 %v51, 24
    %v53 = vpop.permute.xlu0 %52
    %vm54 = vcmask 261312
    %55 = vst.msk [vmem:[%s1] sm:$0xff] %vm54, %v53
    %s56 = scalar_lea.vmem [#allocation0], 2
    %v57 = vld [vmem:[%s56] ss:$8 sm:$0xf]
    %s58 = scalar_lea.vmem [#allocation0], 2
    %v59 = vld [vmem:[%s58] ss:$8 sm:$0xf0]
    %vm60 = vcmask 1047556
    %v61 = vsel %vm60, %v59, %v57
    %62 = vrot.lane.b32.xlu0 %v61, 16
    %v63 = vpop.permute.xlu0 %62
    %vm64 = vcmask 195712
    %65 = vst.msk [vmem:[%s1] sm:$0xff] %vm64, %v63
    %s66 = scalar_lea.vmem [#allocation0], 1
    %v67 = vld [vmem:[%s66] ss:$8 sm:$0xf]
    %s68 = scalar_lea.vmem [#allocation0], 1
    %v69 = vld [vmem:[%s68] ss:$8 sm:$0xf0]
    %vm70 = vcmask 1047556
    %v71 = vsel %vm70, %v69, %v67
    %72 = vrot.lane.b32.xlu0 %v71, 8
    %v73 = vpop.permute.xlu0 %72
    %vm74 = vcmask 130112
    %75 = vst.msk [vmem:[%s1] sm:$0xff] %vm74, %v73

// kernel: encoded_llama_decoder_layer.1
$region0: #{encoded_llama_decoder_layer.1}
  #allocation0 [shape = 'u32[]', space=smem, size = 0x4, offset = 0x4, fixed_abs, tag = 'smem constant byte address 0x4 - core index']
  #allocation1 [shape = 'u32[144,128]{1,0:T(1,128)}', space=vmem, size = 0x12000, scoped, tag = 'internal scratch']
  %s0 = inlined_call_operand.vmem [shape: f32[2,8,32], index: 0, kind: input, shape index: {}]
  %s1 = inlined_call_operand.vmem [shape: bf16[32,32], index: 1, kind: input, shape index: {}]
  %s2 = inlined_call_operand.vmem [shape: bf16[32,32], index: 2, kind: input, shape index: {}]
  %s3 = inlined_call_operand.vmem [shape: bf16[32,32], index: 3, kind: input, shape index: {}]
  %s4 = inlined_call_operand.vmem [shape: bf16[32,32], index: 4, kind: input, shape index: {}]
  %s5 = inlined_call_operand.vmem [shape: f32[1,32], index: 5, kind: input, shape index: {}]
  %s6 = inlined_call_operand.vmem [shape: f32[1,32], index: 6, kind: input, shape index: {}]
  %s7 = inlined_call_operand.vmem [shape: bf16[32,64], index: 7, kind: input, shape index: {}]
  %s8 = inlined_call_operand.vmem [shape: bf16[32,64], index: 8, kind: input, shape index: {}]
  %s9 = inlined_call_operand.vmem [shape: bf16[64,32], index: 9, kind: input, shape index: {}]
  %s10 = inlined_call_operand.vmem [shape: f32[8,32], index: 10, kind: input, shape index: {}]
  %s11 = inlined_call_operand.vmem [shape: f32[8,32], index: 11, kind: input, shape index: {}]
  %s12 = inlined_call_operand.vmem [shape: f32[1,32], index: 12, kind: input, shape index: {}]
  %s13 = inlined_call_operand.hbm [shape: f32[2,8,32], index: 13, kind: output, shape index: {}]
  %s14 = sld [smem:[#allocation0]]
  $region85: #{encoded_llama_decoder_layer.1} parent=0
    _
  %s16 = ssub.s32 1, %s14
  %s17 = scalar_select 0, %s16, %s14
  $region1: #{encoded_llama_decoder_layer.1} parent=0
    #allocation2 [shape = 'u8[8192]{0}', space=vmem, size = 0x2000, scoped, tag = 'output window, operand 0']
    #allocation3 [shape = 's32[2]{0}', space=sflag, size = 0x8, scoped, tag = 'scoped memory for encoded_llama_decoder_layer.1']
    %18 = vsyncpa [#allocation3], 0
    %s19 = scalar_lea.sflag [#allocation3], 1
    %20 = vsyncpa %s19, 0
    loop: start=0, step=1, limit=4
    $region2: #{encoded_llama_decoder_layer.1} parent=1 // loop_pre_header
      _
    $region3: #{encoded_llama_decoder_layer.1} parent=1 // loop_header
      %s22 = sphi 0, %s26
      %p23 = scmp.ge.s32.totalorder %s22, 4
      %s32 = sphi 0, %s34
      %s35 = sphi 0, %s32
      %s36 = sphi 0, %s35
      %s52 = sphi 0, %s36
      %s56 = sphi 0, %s56
      %s58 = sphi 0, %s56
      %s59 = sphi 0, %s58
      %s73 = sphi 0, %s59
      %s77 = sphi 0, %s77
      %s79 = sphi 0, %s77
      %s80 = sphi 0, %s79
      %s94 = sphi 0, %s80
      %s98 = sphi 0, %s98
      %s100 = sphi 0, %s98
      %s101 = sphi 0, %s100
      %s115 = sphi 0, %s101
      %s119 = sphi 0, %s119
      %s121 = sphi 0, %s119
      %s122 = sphi 0, %s121
      %s136 = sphi 0, %s122
      %s140 = sphi 0, %s140
      %s142 = sphi 0, %s140
      %s143 = sphi 0, %s142
      %s157 = sphi 0, %s143
      %s161 = sphi 0, %s161
      %s163 = sphi 0, %s161
      %s164 = sphi 0, %s163
      %s178 = sphi 0, %s164
      %s182 = sphi 0, %s182
      %s184 = sphi 0, %s182
      %s185 = sphi 0, %s184
      %s199 = sphi 0, %s185
      %s203 = sphi 0, %s203
      %s205 = sphi 0, %s203
      %s206 = sphi 0, %s205
      %s220 = sphi 0, %s206
      %s224 = sphi 0, %s224
      %s226 = sphi 0, %s224
      %s227 = sphi 0, %s226
      %s241 = sphi 0, %s227
      %s245 = sphi 0, %s245
      %s247 = sphi 0, %s245
      %s248 = sphi 0, %s247
      %s262 = sphi 0, %s248
      %s266 = sphi 0, %s266
      %s268 = sphi 0, %s266
      %s269 = sphi 0, %s268
      %s283 = sphi 0, %s269
      %s287 = sphi 0, %s287
      %s289 = sphi 0, %s287
      %s290 = sphi 0, %s289
      %s304 = sphi 0, %s290
      %s310 = sphi 0, %s312
      %s313 = sphi 0, %s310
      %s314 = sphi 0, %s313
      %s330 = sphi 0, %s314
    $region4: #{encoded_llama_decoder_layer.1} parent=1 // loop_header_branch
      %25 = sbr.rel (%p23) target = $region8
    $region5: #{encoded_llama_decoder_layer.1} parent=1 // loop_body
      %s27 = ssub.s32 %s22, 1
      %s28 = ssub.s32 %s22, 2
      %s29 = sadd.s32 %s22, 1
      %s30 = ssub.s32 %s22, %s29
      %p31 = scmp.eq.s32.totalorder %s30, 0
      %s33 = sadd.s32 %s32, 1
      %s34 = scalar_select %p31, %s32, %s33
      %p37 = pneg %p31
      %p38 = scmp.eq.s32.totalorder %s22, 1
      %p39 = por %p37, %p38
      %p40 = scmp.ne.s32.totalorder %s32, %s35
      %p41 = scmp.eq.s32.totalorder %s22, 0
      %p42 = por %p40, %p41
      %p43 = scmp.ne.s32.totalorder %s32, %s35
      %p44 = scmp.eq.s32.totalorder %s27, 1
      %p45 = por %p43, %p44
      %p46 = scmp.ne.s32.totalorder %s35, %s36
      %p47 = scmp.eq.s32.totalorder %s27, 0
      %p48 = por %p46, %p47
      %p49 = scmp.ne.s32.totalorder %s35, %s36
      %p50 = scmp.eq.s32.totalorder %s28, 1
      %p51 = por %p49, %p50
      %p53 = scmp.ne.s32.totalorder %s36, %s52
      %p54 = scmp.eq.s32.totalorder %s28, 0
      %p55 = por %p53, %p54
      %s57 = sadd.s32 %s56, 1
      %p60 = scmp.eq.s32.totalorder %s22, 1
      %p61 = scmp.ne.s32.totalorder %s56, %s58
      %p62 = scmp.eq.s32.totalorder %s22, 0
      %p63 = por %p61, %p62
      %p64 = scmp.ne.s32.totalorder %s56, %s58
      %p65 = scmp.eq.s32.totalorder %s27, 1
      %p66 = por %p64, %p65
      %p67 = scmp.ne.s32.totalorder %s58, %s59
      %p68 = scmp.eq.s32.totalorder %s27, 0
      %p69 = por %p67, %p68
      %p70 = scmp.ne.s32.totalorder %s58, %s59
      %p71 = scmp.eq.s32.totalorder %s28, 1
      %p72 = por %p70, %p71
      %p74 = scmp.ne.s32.totalorder %s59, %s73
      %p75 = scmp.eq.s32.totalorder %s28, 0
      %p76 = por %p74, %p75
      %s78 = sadd.s32 %s77, 1
      %p81 = scmp.eq.s32.totalorder %s22, 1
      %p82 = scmp.ne.s32.totalorder %s77, %s79
      %p83 = scmp.eq.s32.totalorder %s22, 0
      %p84 = por %p82, %p83
      %p85 = scmp.ne.s32.totalorder %s77, %s79
      %p86 = scmp.eq.s32.totalorder %s27, 1
      %p87 = por %p85, %p86
      %p88 = scmp.ne.s32.totalorder %s79, %s80
      %p89 = scmp.eq.s32.totalorder %s27, 0
      %p90 = por %p88, %p89
      %p91 = scmp.ne.s32.totalorder %s79, %s80
      %p92 = scmp.eq.s32.totalorder %s28, 1
      %p93 = por %p91, %p92
      %p95 = scmp.ne.s32.totalorder %s80, %s94
      %p96 = scmp.eq.s32.totalorder %s28, 0
      %p97 = por %p95, %p96
      %s99 = sadd.s32 %s98, 1
      %p102 = scmp.eq.s32.totalorder %s22, 1
      %p103 = scmp.ne.s32.totalorder %s98, %s100
      %p104 = scmp.eq.s32.totalorder %s22, 0
      %p105 = por %p103, %p104
      %p106 = scmp.ne.s32.totalorder %s98, %s100
      %p107 = scmp.eq.s32.totalorder %s27, 1
      %p108 = por %p106, %p107
      %p109 = scmp.ne.s32.totalorder %s100, %s101
      %p110 = scmp.eq.s32.totalorder %s27, 0
      %p111 = por %p109, %p110
      %p112 = scmp.ne.s32.totalorder %s100, %s101
      %p113 = scmp.eq.s32.totalorder %s28, 1
      %p114 = por %p112, %p113
      %p116 = scmp.ne.s32.totalorder %s101, %s115
      %p117 = scmp.eq.s32.totalorder %s28, 0
      %p118 = por %p116, %p117
      %s120 = sadd.s32 %s119, 1
      %p123 = scmp.eq.s32.totalorder %s22, 1
      %p124 = scmp.ne.s32.totalorder %s119, %s121
      %p125 = scmp.eq.s32.totalorder %s22, 0
      %p126 = por %p124, %p125
      %p127 = scmp.ne.s32.totalorder %s119, %s121
      %p128 = scmp.eq.s32.totalorder %s27, 1
      %p129 = por %p127, %p128
      %p130 = scmp.ne.s32.totalorder %s121, %s122
      %p131 = scmp.eq.s32.totalorder %s27, 0
      %p132 = por %p130, %p131
      %p133 = scmp.ne.s32.totalorder %s121, %s122
      %p134 = scmp.eq.s32.totalorder %s28, 1
      %p135 = por %p133, %p134
      %p137 = scmp.ne.s32.totalorder %s122, %s136
      %p138 = scmp.eq.s32.totalorder %s28, 0
      %p139 = por %p137, %p138
      %s141 = sadd.s32 %s140, 1
      %p144 = scmp.eq.s32.totalorder %s22, 1
      %p145 = scmp.ne.s32.totalorder %s140, %s142
      %p146 = scmp.eq.s32.totalorder %s22, 0
      %p147 = por %p145, %p146
      %p148 = scmp.ne.s32.totalorder %s140, %s142
      %p149 = scmp.eq.s32.totalorder %s27, 1
      %p150 = por %p148, %p149
      %p151 = scmp.ne.s32.totalorder %s142, %s143
      %p152 = scmp.eq.s32.totalorder %s27, 0
      %p153 = por %p151, %p152
      %p154 = scmp.ne.s32.totalorder %s142, %s143
      %p155 = scmp.eq.s32.totalorder %s28, 1
      %p156 = por %p154, %p155
      %p158 = scmp.ne.s32.totalorder %s143, %s157
      %p159 = scmp.eq.s32.totalorder %s28, 0
      %p160 = por %p158, %p159
      %s162 = sadd.s32 %s161, 1
      %p165 = scmp.eq.s32.totalorder %s22, 1
      %p166 = scmp.ne.s32.totalorder %s161, %s163
      %p167 = scmp.eq.s32.totalorder %s22, 0
      %p168 = por %p166, %p167
      %p169 = scmp.ne.s32.totalorder %s161, %s163
      %p170 = scmp.eq.s32.totalorder %s27, 1
      %p171 = por %p169, %p170
      %p172 = scmp.ne.s32.totalorder %s163, %s164
      %p173 = scmp.eq.s32.totalorder %s27, 0
      %p174 = por %p172, %p173
      %p175 = scmp.ne.s32.totalorder %s163, %s164
      %p176 = scmp.eq.s32.totalorder %s28, 1
      %p177 = por %p175, %p176
      %p179 = scmp.ne.s32.totalorder %s164, %s178
      %p180 = scmp.eq.s32.totalorder %s28, 0
      %p181 = por %p179, %p180
      %s183 = sadd.s32 %s182, 1
      %p186 = scmp.eq.s32.totalorder %s22, 1
      %p187 = scmp.ne.s32.totalorder %s182, %s184
      %p188 = scmp.eq.s32.totalorder %s22, 0
      %p189 = por %p187, %p188
      %p190 = scmp.ne.s32.totalorder %s182, %s184
      %p191 = scmp.eq.s32.totalorder %s27, 1
      %p192 = por %p190, %p191
      %p193 = scmp.ne.s32.totalorder %s184, %s185
      %p194 = scmp.eq.s32.totalorder %s27, 0
      %p195 = por %p193, %p194
      %p196 = scmp.ne.s32.totalorder %s184, %s185
      %p197 = scmp.eq.s32.totalorder %s28, 1
      %p198 = por %p196, %p197
      %p200 = scmp.ne.s32.totalorder %s185, %s199
      %p201 = scmp.eq.s32.totalorder %s28, 0
      %p202 = por %p200, %p201
      %s204 = sadd.s32 %s203, 1
      %p207 = scmp.eq.s32.totalorder %s22, 1
      %p208 = scmp.ne.s32.totalorder %s203, %s205
      %p209 = scmp.eq.s32.totalorder %s22, 0
      %p210 = por %p208, %p209
      %p211 = scmp.ne.s32.totalorder %s203, %s205
      %p212 = scmp.eq.s32.totalorder %s27, 1
      %p213 = por %p211, %p212
      %p214 = scmp.ne.s32.totalorder %s205, %s206
      %p215 = scmp.eq.s32.totalorder %s27, 0
      %p216 = por %p214, %p215
      %p217 = scmp.ne.s32.totalorder %s205, %s206
      %p218 = scmp.eq.s32.totalorder %s28, 1
      %p219 = por %p217, %p218
      %p221 = scmp.ne.s32.totalorder %s206, %s220
      %p222 = scmp.eq.s32.totalorder %s28, 0
      %p223 = por %p221, %p222
      %s225 = sadd.s32 %s224, 1
      %p228 = scmp.eq.s32.totalorder %s22, 1
      %p229 = scmp.ne.s32.totalorder %s224, %s226
      %p230 = scmp.eq.s32.totalorder %s22, 0
      %p231 = por %p229, %p230
      %p232 = scmp.ne.s32.totalorder %s224, %s226
      %p233 = scmp.eq.s32.totalorder %s27, 1
      %p234 = por %p232, %p233
      %p235 = scmp.ne.s32.totalorder %s226, %s227
      %p236 = scmp.eq.s32.totalorder %s27, 0
      %p237 = por %p235, %p236
      %p238 = scmp.ne.s32.totalorder %s226, %s227
      %p239 = scmp.eq.s32.totalorder %s28, 1
      %p240 = por %p238, %p239
      %p242 = scmp.ne.s32.totalorder %s227, %s241
      %p243 = scmp.eq.s32.totalorder %s28, 0
      %p244 = por %p242, %p243
      %s246 = sadd.s32 %s245, 1
      %p249 = scmp.eq.s32.totalorder %s22, 1
      %p250 = scmp.ne.s32.totalorder %s245, %s247
      %p251 = scmp.eq.s32.totalorder %s22, 0
      %p252 = por %p250, %p251
      %p253 = scmp.ne.s32.totalorder %s245, %s247
      %p254 = scmp.eq.s32.totalorder %s27, 1
      %p255 = por %p253, %p254
      %p256 = scmp.ne.s32.totalorder %s247, %s248
      %p257 = scmp.eq.s32.totalorder %s27, 0
      %p258 = por %p256, %p257
      %p259 = scmp.ne.s32.totalorder %s247, %s248
      %p260 = scmp.eq.s32.totalorder %s28, 1
      %p261 = por %p259, %p260
      %p263 = scmp.ne.s32.totalorder %s248, %s262
      %p264 = scmp.eq.s32.totalorder %s28, 0
      %p265 = por %p263, %p264
      %s267 = sadd.s32 %s266, 1
      %p270 = scmp.eq.s32.totalorder %s22, 1
      %p271 = scmp.ne.s32.totalorder %s266, %s268
      %p272 = scmp.eq.s32.totalorder %s22, 0
      %p273 = por %p271, %p272
      %p274 = scmp.ne.s32.totalorder %s266, %s268
      %p275 = scmp.eq.s32.totalorder %s27, 1
      %p276 = por %p274, %p275
      %p277 = scmp.ne.s32.totalorder %s268, %s269
      %p278 = scmp.eq.s32.totalorder %s27, 0
      %p279 = por %p277, %p278
      %p280 = scmp.ne.s32.totalorder %s268, %s269
      %p281 = scmp.eq.s32.totalorder %s28, 1
      %p282 = por %p280, %p281
      %p284 = scmp.ne.s32.totalorder %s269, %s283
      %p285 = scmp.eq.s32.totalorder %s28, 0
      %p286 = por %p284, %p285
      %s288 = sadd.s32 %s287, 1
      %p291 = scmp.eq.s32.totalorder %s22, 1
      %p292 = scmp.ne.s32.totalorder %s287, %s289
      %p293 = scmp.eq.s32.totalorder %s22, 0
      %p294 = por %p292, %p293
      %p295 = scmp.ne.s32.totalorder %s287, %s289
      %p296 = scmp.eq.s32.totalorder %s27, 1
      %p297 = por %p295, %p296
      %p298 = scmp.ne.s32.totalorder %s289, %s290
      %p299 = scmp.eq.s32.totalorder %s27, 0
      %p300 = por %p298, %p299
      %p301 = scmp.ne.s32.totalorder %s289, %s290
      %p302 = scmp.eq.s32.totalorder %s28, 1
      %p303 = por %p301, %p302
      %p305 = scmp.ne.s32.totalorder %s290, %s304
      %p306 = scmp.eq.s32.totalorder %s28, 0
      %p307 = por %p305, %p306
      %s308 = ssub.s32 %s22, %s29
      %p309 = scmp.eq.s32.totalorder %s308, 0
      %s311 = sadd.s32 %s310, 1
      %s312 = scalar_select %p309, %s310, %s311
      %p315 = pneg %p309
      %p316 = scmp.eq.s32.totalorder %s22, 1
      %p317 = por %p315, %p316
      %p318 = scmp.ne.s32.totalorder %s310, %s313
      %p319 = scmp.eq.s32.totalorder %s22, 0
      %p320 = por %p318, %p319
      %p321 = scmp.ne.s32.totalorder %s310, %s313
      %p322 = scmp.eq.s32.totalorder %s27, 1
      %p323 = por %p321, %p322
      %p324 = scmp.ne.s32.totalorder %s313, %s314
      %p325 = scmp.eq.s32.totalorder %s27, 0
      %p326 = por %p324, %p325
      %p327 = scmp.ne.s32.totalorder %s313, %s314
      %p328 = scmp.eq.s32.totalorder %s28, 1
      %p329 = por %p327, %p328
      %p331 = scmp.ne.s32.totalorder %s314, %s330
      %p332 = scmp.eq.s32.totalorder %s28, 0
      %p333 = por %p331, %p332
      %p334 = scmp.le.s32.totalorder 1, %s22
      %p335 = scmp.lt.s32.totalorder %s22, 3
      %p336 = pnand %p334, %p335
      %p337 = pneg %p336
      // Predicated region
      $region9: #{encoded_llama_decoder_layer.1} parent=5 // pred_check
        _
      $region10: #{encoded_llama_decoder_layer.1} parent=5 // pred_check_branch
        %339 = sbr.rel (%p336) target = $region12
      $region11: #{encoded_llama_decoder_layer.1} parent=5 // pred_region
        %s340 = ssub.s32 %s22, 1
        // Predicated region
        $region13: #{encoded_llama_decoder_layer.1} parent=11 // pred_check
          %p341 = pneg %p69
        $region14: #{encoded_llama_decoder_layer.1} parent=11 // pred_check_branch
          %343 = sbr.rel (%p341) target = $region16
        $region15: #{encoded_llama_decoder_layer.1} parent=11 // pred_region
          _
        $region16: #{encoded_llama_decoder_layer.1} parent=11 // pred_fallthru
          _
        // Predicated region
        $region17: #{encoded_llama_decoder_layer.1} parent=11 // pred_check
          %p344 = pneg %p90
        $region18: #{encoded_llama_decoder_layer.1} parent=11 // pred_check_branch
          %346 = sbr.rel (%p344) target = $region20
        $region19: #{encoded_llama_decoder_layer.1} parent=11 // pred_region
          _
        $region20: #{encoded_llama_decoder_layer.1} parent=11 // pred_fallthru
          _
        // Predicated region
        $region21: #{encoded_llama_decoder_layer.1} parent=11 // pred_check
          %p347 = pneg %p111
        $region22: #{encoded_llama_decoder_layer.1} parent=11 // pred_check_branch
          %349 = sbr.rel (%p347) target = $region24
        $region23: #{encoded_llama_decoder_layer.1} parent=11 // pred_region
          _
        $region24: #{encoded_llama_decoder_layer.1} parent=11 // pred_fallthru
          _
        // Predicated region
        $region25: #{encoded_llama_decoder_layer.1} parent=11 // pred_check
          %p350 = pneg %p132
        $region26: #{encoded_llama_decoder_layer.1} parent=11 // pred_check_branch
          %352 = sbr.rel (%p350) target = $region28
        $region27: #{encoded_llama_decoder_layer.1} parent=11 // pred_region
          _
        $region28: #{encoded_llama_decoder_layer.1} parent=11 // pred_fallthru
          _
        // Predicated region
        $region29: #{encoded_llama_decoder_layer.1} parent=11 // pred_check
          %p353 = pneg %p153
        $region30: #{encoded_llama_decoder_layer.1} parent=11 // pred_check_branch
          %355 = sbr.rel (%p353) target = $region32
        $region31: #{encoded_llama_decoder_layer.1} parent=11 // pred_region
          _
        $region32: #{encoded_llama_decoder_layer.1} parent=11 // pred_fallthru
          _
        // Predicated region
        $region33: #{encoded_llama_decoder_layer.1} parent=11 // pred_check
          %p356 = pneg %p174
        $region34: #{encoded_llama_decoder_layer.1} parent=11 // pred_check_branch
          %358 = sbr.rel (%p356) target = $region36
        $region35: #{encoded_llama_decoder_layer.1} parent=11 // pred_region
          _
        $region36: #{encoded_llama_decoder_layer.1} parent=11 // pred_fallthru
          _
        // Predicated region
        $region37: #{encoded_llama_decoder_layer.1} parent=11 // pred_check
          %p359 = pneg %p195
        $region38: #{encoded_llama_decoder_layer.1} parent=11 // pred_check_branch
          %361 = sbr.rel (%p359) target = $region40
        $region39: #{encoded_llama_decoder_layer.1} parent=11 // pred_region
          _
        $region40: #{encoded_llama_decoder_layer.1} parent=11 // pred_fallthru
          _
        // Predicated region
        $region41: #{encoded_llama_decoder_layer.1} parent=11 // pred_check
          %p362 = pneg %p216
        $region42: #{encoded_llama_decoder_layer.1} parent=11 // pred_check_branch
          %364 = sbr.rel (%p362) target = $region44
        $region43: #{encoded_llama_decoder_layer.1} parent=11 // pred_region
          _
        $region44: #{encoded_llama_decoder_layer.1} parent=11 // pred_fallthru
          _
        // Predicated region
        $region45: #{encoded_llama_decoder_layer.1} parent=11 // pred_check
          %p365 = pneg %p237
        $region46: #{encoded_llama_decoder_layer.1} parent=11 // pred_check_branch
          %367 = sbr.rel (%p365) target = $region48
        $region47: #{encoded_llama_decoder_layer.1} parent=11 // pred_region
          _
        $region48: #{encoded_llama_decoder_layer.1} parent=11 // pred_fallthru
          _
        // Predicated region
        $region49: #{encoded_llama_decoder_layer.1} parent=11 // pred_check
          %p368 = pneg %p258
        $region50: #{encoded_llama_decoder_layer.1} parent=11 // pred_check_branch
          %370 = sbr.rel (%p368) target = $region52
        $region51: #{encoded_llama_decoder_layer.1} parent=11 // pred_region
          _
        $region52: #{encoded_llama_decoder_layer.1} parent=11 // pred_fallthru
          _
        // Predicated region
        $region53: #{encoded_llama_decoder_layer.1} parent=11 // pred_check
          %p371 = pneg %p279
        $region54: #{encoded_llama_decoder_layer.1} parent=11 // pred_check_branch
          %373 = sbr.rel (%p371) target = $region56
        $region55: #{encoded_llama_decoder_layer.1} parent=11 // pred_region
          _
        $region56: #{encoded_llama_decoder_layer.1} parent=11 // pred_fallthru
          _
        // Predicated region
        $region57: #{encoded_llama_decoder_layer.1} parent=11 // pred_check
          %p374 = pneg %p300
        $region58: #{encoded_llama_decoder_layer.1} parent=11 // pred_check_branch
          %376 = sbr.rel (%p374) target = $region60
        $region59: #{encoded_llama_decoder_layer.1} parent=11 // pred_region
          _
        $region60: #{encoded_llama_decoder_layer.1} parent=11 // pred_fallthru
          _
      $region12: #{encoded_llama_decoder_layer.1} parent=5 // pred_fallthru
        _
      %p377 = scmp.lt.s32.totalorder %s22, 2
      // Predicated region
      $region61: #{encoded_llama_decoder_layer.1} parent=5 // pred_check
        %p378 = pneg %p377
      $region62: #{encoded_llama_decoder_layer.1} parent=5 // pred_check_branch
        %380 = sbr.rel (%p378) target = $region64
      $region63: #{encoded_llama_decoder_layer.1} parent=5 // pred_region
        // Predicated region
        $region65: #{encoded_llama_decoder_layer.1} parent=63 // pred_check
          %p381 = pneg %p42
        $region66: #{encoded_llama_decoder_layer.1} parent=63 // pred_check_branch
          %383 = sbr.rel (%p381) target = $region68
        $region67: #{encoded_llama_decoder_layer.1} parent=63 // pred_region
          %p384 = scmp.lt.s32.totalorder %s22, 1
          %s385 = scalar_select %p384, %s22, 1
          %s386 = smul.addr %s385, 8
          %s387 = scalar_lea.vmem %s0, %s386
        $region68: #{encoded_llama_decoder_layer.1} parent=63 // pred_fallthru
          _
      $region64: #{encoded_llama_decoder_layer.1} parent=5 // pred_fallthru
        _
      %p388 = scmp.le.s32.totalorder 1, %s22
      %p389 = scmp.lt.s32.totalorder %s22, 3
      %p390 = pnand %p388, %p389
      %p391 = pneg %p390
      // Predicated region
      $region69: #{encoded_llama_decoder_layer.1} parent=5 // pred_check
        _
      $region70: #{encoded_llama_decoder_layer.1} parent=5 // pred_check_branch
        %393 = sbr.rel (%p390) target = $region72
      $region71: #{encoded_llama_decoder_layer.1} parent=5 // pred_region
        %s394 = ssub.s32 %s22, 1
        %p395 = scmp.lt.s32.totalorder %s27, 1
        %s396 = scalar_select %p395, %s27, 1
        %s397 = smul.addr %s396, 8
        %s398 = scalar_lea.vmem %s0, %s397
        %p399 = pneg %p48
        %p400 = pneg %p45
        %p401 = pneg %p69
        %p402 = pneg %p66
        %p403 = pneg %p90
        %p404 = pneg %p87
        %p405 = pneg %p111
        %p406 = pneg %p108
        %p407 = pneg %p132
        %p408 = pneg %p129
        %p409 = pneg %p153
        %p410 = pneg %p150
        %p411 = pneg %p174
        %p412 = pneg %p171
        %p413 = pneg %p195
        %p414 = pneg %p192
        %p415 = pneg %p216
        %p416 = pneg %p213
        %p417 = pneg %p237
        %p418 = pneg %p234
        %p419 = pneg %p258
        %p420 = pneg %p255
        %p421 = pneg %p279
        %p422 = pneg %p276
        %p423 = pneg %p300
        %p424 = pneg %p297
        %p425 = pneg %p326
        %p426 = pneg %p323
        %s427 = sand.u32 %s313, 1
        %s428 = scalar_lea.sflag [#allocation3], %s427
        %s429 = sand.u32 %s313, 1
        %s430 = smul.addr %s429, 8
        %s431 = scalar_lea.vmem [#allocation2], %s430
        %p432 = scmp.lt.s32.totalorder %s27, 1
        %s433 = scalar_select %p432, %s27, 1
        %s434 = smul.addr %s433, 8
        %s435 = scalar_lea.vmem %s0, %s434
        %v437 = vld [vmem:[%s435] sm:$0xff]
        %v438 = vmul.f32 %v437, %v437
        %vm439 = vcmask 261120
        %v440 = vsel %vm439, %v438, 0.0
        %441 = vadd.xlane.f32.xlu0 %v440
        %v442 = vpop.xlane.xlu0 %441
        %v443 = vrcp.pop 32.0
        %v444 = vmul.f32 %v442, %v443
        %v445 = vadd.f32 %v444, 1e-06
        %v446 = vrsqrt.pop %v445
        %v447 = vmul.f32 %v437, %v446
        %v448 = vld [vmem:[%s5] sm:$0x1]
        %v450 = vlaneseq
        %v451 = vshrl.u32 %v450, 7
        %v452 = vsub.s32 0, %v451
        %v453 = vrot.slane %v448, %v452
        %v455 = vmul.f32 %v447, %v453
        %v456 = vpack.c.bf16 %v455, %v455
        %v457 = vld [vmem:[%s1] sm:$0xf]
        %v458 = vld [vmem:[%s1 + $0x4] sm:$0xf]
        %v459 = vld [vmem:[%s1 + $0x8] sm:$0xf]
        %v460 = vld [vmem:[%s1 + $0xc] sm:$0xf]
        %v465 = vunpack.c.l.b16 %v457
        %v466 = vunpack.c.l.b16 %v458
        %v467 = vunpack.c.l.b16 %v459
        %v468 = vunpack.c.l.b16 %v460
        %v469 = vpack.c.b16 %v466, %v465
        %v470 = vpack.c.b16 %v468, %v467
        %v474 = vsel %vm439, %v456, 0
        %476 = vmatprep.subr.bf16.mxu0 0
        %477 = vmatpush1.bf16.msra.mxu0 %v469
        %478 = vmatprep.subr.bf16.mxu0 0
        %479 = vmatpush1.bf16.msra.mxu0 %v470
        %480 = vmatprep.subr.bf16.mxu0 0
        %481 = vmatpush1.bf16.msra.mxu0 0
        %482 = vmatprep.subr.bf16.mxu0 0
        %483 = vmatpush1.bf16.msra.mxu0 0
        %484 = vmatprep.subr.bf16.mxu0 0
        %485 = vmatpush1.bf16.msra.mxu0 0
        %486 = vmatprep.subr.bf16.mxu0 0
        %487 = vmatpush1.bf16.msra.mxu0 0
        %488 = vmatprep.subr.bf16.mxu0 0
        %489 = vmatpush1.bf16.msra.mxu0 0
        %490 = vmatprep.subr.bf16.mxu0 0
        %491 = vmatpush1.bf16.msra.mxu0 0
        %492 = vmatprep.subr.bf16.mxu0 0
        %493 = vmatpush1.bf16.msra.mxu0 0
        %494 = vmatprep.subr.bf16.mxu0 0
        %495 = vmatpush1.bf16.msra.mxu0 0
        %496 = vmatprep.subr.bf16.mxu0 0
        %497 = vmatpush1.bf16.msra.mxu0 0
        %498 = vmatprep.subr.bf16.mxu0 0
        %499 = vmatpush1.bf16.msra.mxu0 0
        %500 = vmatprep.subr.bf16.mxu0 0
        %501 = vmatpush1.bf16.msra.mxu0 0
        %502 = vmatprep.subr.bf16.mxu0 0
        %503 = vmatpush1.bf16.msra.mxu0 0
        %504 = vmatprep.subr.bf16.mxu0 0
        %505 = vmatpush1.bf16.msra.mxu0 0
        %506 = vmatprep.subr.bf16.mxu0 0
        %507 = vmatpush1.bf16.msra.mxu0 0
        %508 = vmatprep.mubr.bf16.mxu0 0
        %509 = vmatmul.mubr.bf16.gmra.mrb[0].mxu0 %v474
        %v510 = vpop.f32.mrb[0].mxu0
        %v511 = vadd.f32 0.0, %v510
        %v512 = vpop.f32.mrb[0].mxu0
        %v513 = vpop.f32.mrb[0].mxu0
        %v514 = vpop.f32.mrb[0].mxu0
        %515 = vdwg.mxu0
        %v516 = vld [vmem:[%s2] sm:$0xf]
        %v517 = vld [vmem:[%s2 + $0x4] sm:$0xf]
        %v518 = vld [vmem:[%s2 + $0x8] sm:$0xf]
        %v519 = vld [vmem:[%s2 + $0xc] sm:$0xf]
        %v524 = vunpack.c.l.b16 %v516
        %v525 = vunpack.c.l.b16 %v517
        %v526 = vunpack.c.l.b16 %v518
        %v527 = vunpack.c.l.b16 %v519
        %v528 = vpack.c.b16 %v525, %v524
        %v529 = vpack.c.b16 %v527, %v526
        %532 = vmatprep.subr.bf16.mxu0 0
        %533 = vmatpush1.bf16.msra.mxu0 %v528
        %534 = vmatprep.subr.bf16.mxu0 0
        %535 = vmatpush1.bf16.msra.mxu0 %v529
        %536 = vmatprep.subr.bf16.mxu0 0
        %537 = vmatpush1.bf16.msra.mxu0 0
        %538 = vmatprep.subr.bf16.mxu0 0
        %539 = vmatpush1.bf16.msra.mxu0 0
        %540 = vmatprep.subr.bf16.mxu0 0
        %541 = vmatpush1.bf16.msra.mxu0 0
        %542 = vmatprep.subr.bf16.mxu0 0
        %543 = vmatpush1.bf16.msra.mxu0 0
        %544 = vmatprep.subr.bf16.mxu0 0
        %545 = vmatpush1.bf16.msra.mxu0 0
        %546 = vmatprep.subr.bf16.mxu0 0
        %547 = vmatpush1.bf16.msra.mxu0 0
        %548 = vmatprep.subr.bf16.mxu0 0
        %549 = vmatpush1.bf16.msra.mxu0 0
        %550 = vmatprep.subr.bf16.mxu0 0
        %551 = vmatpush1.bf16.msra.mxu0 0
        %552 = vmatprep.subr.bf16.mxu0 0
        %553 = vmatpush1.bf16.msra.mxu0 0
        %554 = vmatprep.subr.bf16.mxu0 0
        %555 = vmatpush1.bf16.msra.mxu0 0
        %556 = vmatprep.subr.bf16.mxu0 0
        %557 = vmatpush1.bf16.msra.mxu0 0
        %558 = vmatprep.subr.bf16.mxu0 0
        %559 = vmatpush1.bf16.msra.mxu0 0
        %560 = vmatprep.subr.bf16.mxu0 0
        %561 = vmatpush1.bf16.msra.mxu0 0
        %562 = vmatprep.subr.bf16.mxu0 0
        %563 = vmatpush1.bf16.msra.mxu0 0
        %564 = vmatprep.mubr.bf16.mxu0 0
        %565 = vmatmul.mubr.bf16.gmra.mrb[0].mxu0 %v474
        %v566 = vpop.f32.mrb[0].mxu0
        %v567 = vadd.f32 0.0, %v566
        %v568 = vpop.f32.mrb[0].mxu0
        %v569 = vpop.f32.mrb[0].mxu0
        %v570 = vpop.f32.mrb[0].mxu0
        %571 = vdwg.mxu0
        %v572 = vld [vmem:[%s3] sm:$0xf]
        %v573 = vld [vmem:[%s3 + $0x4] sm:$0xf]
        %v574 = vld [vmem:[%s3 + $0x8] sm:$0xf]
        %v575 = vld [vmem:[%s3 + $0xc] sm:$0xf]
        %v580 = vunpack.c.l.b16 %v572
        %v581 = vunpack.c.l.b16 %v573
        %v582 = vunpack.c.l.b16 %v574
        %v583 = vunpack.c.l.b16 %v575
        %v584 = vpack.c.b16 %v581, %v580
        %v585 = vpack.c.b16 %v583, %v582
        %588 = vmatprep.subr.bf16.mxu0 0
        %589 = vmatpush1.bf16.msra.mxu0 %v584
        %590 = vmatprep.subr.bf16.mxu0 0
        %591 = vmatpush1.bf16.msra.mxu0 %v585
        %592 = vmatprep.subr.bf16.mxu0 0
        %593 = vmatpush1.bf16.msra.mxu0 0
        %594 = vmatprep.subr.bf16.mxu0 0
        %595 = vmatpush1.bf16.msra.mxu0 0
        %596 = vmatprep.subr.bf16.mxu0 0
        %597 = vmatpush1.bf16.msra.mxu0 0
        %598 = vmatprep.subr.bf16.mxu0 0
        %599 = vmatpush1.bf16.msra.mxu0 0
        %600 = vmatprep.subr.bf16.mxu0 0
        %601 = vmatpush1.bf16.msra.mxu0 0
        %602 = vmatprep.subr.bf16.mxu0 0
        %603 = vmatpush1.bf16.msra.mxu0 0
        %604 = vmatprep.subr.bf16.mxu0 0
        %605 = vmatpush1.bf16.msra.mxu0 0
        %606 = vmatprep.subr.bf16.mxu0 0
        %607 = vmatpush1.bf16.msra.mxu0 0
        %608 = vmatprep.subr.bf16.mxu0 0
        %609 = vmatpush1.bf16.msra.mxu0 0
        %610 = vmatprep.subr.bf16.mxu0 0
        %611 = vmatpush1.bf16.msra.mxu0 0
        %612 = vmatprep.subr.bf16.mxu0 0
        %613 = vmatpush1.bf16.msra.mxu0 0
        %614 = vmatprep.subr.bf16.mxu0 0
        %615 = vmatpush1.bf16.msra.mxu0 0
        %616 = vmatprep.subr.bf16.mxu0 0
        %617 = vmatpush1.bf16.msra.mxu0 0
        %618 = vmatprep.subr.bf16.mxu0 0
        %619 = vmatpush1.bf16.msra.mxu0 0
        %620 = vmatprep.mubr.bf16.mxu0 0
        %621 = vmatmul.mubr.bf16.gmra.mrb[0].mxu0 %v474
        %v622 = vpop.f32.mrb[0].mxu0
        %v623 = vadd.f32 0.0, %v622
        %v624 = vpop.f32.mrb[0].mxu0
        %v625 = vpop.f32.mrb[0].mxu0
        %v626 = vpop.f32.mrb[0].mxu0
        %627 = vdwg.mxu0
        %v628 = vld [vmem:[%s10] sm:$0xff]
        %v629 = vld [vmem:[%s11] sm:$0xff]
        %v630 = vlaneseq
        %v631 = vand.u32 %v630, 127
        %vm632 = vcmp.lt.s32.totalorder %v631, 0
        %v633 = vsub.s32 0, %v631
        %v634 = vsel %vm632, %v633, %v631
        %v635 = vshrl.u32 %v634, 3
        %v636 = vand.u32 %v634, 7
        %v637 = vsub.s32 0, %v636
        %v638 = vsel %vm632, %v637, %v636
        %vm639 = vcmp.ne.s32.totalorder %v638, 0
        %vm640 = vcmp.lt.s32.totalorder %v638, 0
        %vm641 = vmand %vm640, %vm639
        %v642 = vadd.s32 %v638, 8
        %v643 = vsel %vm641, %v642, %v638
        %vm644 = vcmp.lt.s32.totalorder %v643, 4
        %vm645 = vcmask 1047808
        %646 = vrot.lane.b32.xlu0 %v511, 32
        %v647 = vpop.permute.xlu0 %646
        %v648 = vsel %vm645, %v647, %v511
        %649 = vrot.lane.b32.xlu0 %v648, 32
        %v650 = vpop.permute.xlu0 %649
        %v651 = vsel %vm645, %v650, %v511
        %653 = vrot.lane.b32.xlu0 %v651, 124
        %v654 = vpop.permute.xlu0 %653
        %656 = vrot.lane.b32.xlu0 %v651, 100
        %v657 = vpop.permute.xlu0 %656
        %v659 = vsel %vm644, %v654, %v657
        %v660 = vmul.f32 %v511, %v628
        %v661 = vmul.f32 %v659, %v629
        %v662 = vadd.f32 %v660, %v661
        %v663 = vpack.c.bf16 %v662, %v662
        %664 = vrot.lane.b32.xlu0 %v567, 32
        %v665 = vpop.permute.xlu0 %664
        %v666 = vsel %vm645, %v665, %v567
        %667 = vrot.lane.b32.xlu0 %v666, 32
        %v668 = vpop.permute.xlu0 %667
        %v669 = vsel %vm645, %v668, %v567
        %671 = vrot.lane.b32.xlu0 %v669, 124
        %v672 = vpop.permute.xlu0 %671
        %674 = vrot.lane.b32.xlu0 %v669, 100
        %v675 = vpop.permute.xlu0 %674
        %v677 = vsel %vm644, %v672, %v675
        %v678 = vmul.f32 %v567, %v628
        %v679 = vmul.f32 %v677, %v629
        %v680 = vadd.f32 %v678, %v679
        %v681 = vpack.c.bf16 %v680, %v680
        %v682 = vpack.c.bf16 %v623, %v623
        %v683 = vlaneseq
        %v684 = vshrl.u32 %v683, 7
        %vm685 = vcmp.le.s32.totalorder %v631, %v684
        %vm686 = vcmask 64512
        %v688 = vsel %vm686, %v663, 0
        %v691 = vsel %vm686, %v681, 0
        %693 = vmatprep.subr.bf16.mxu0 0
        %694 = vmatpush1.bf16.xpose.msra.mxu0 %v691
        %695 = vmatprep.subr.bf16.mxu0 0
        %696 = vmatpush1.bf16.xpose.msra.mxu0 0
        %697 = vmatprep.subr.bf16.mxu0 0
        %698 = vmatpush1.bf16.xpose.msra.mxu0 0
        %699 = vmatprep.subr.bf16.mxu0 0
        %700 = vmatpush1.bf16.xpose.msra.mxu0 0
        %701 = vmatprep.subr.bf16.mxu0 0
        %702 = vmatpush1.bf16.xpose.msra.mxu0 0
        %703 = vmatprep.subr.bf16.mxu0 0
        %704 = vmatpush1.bf16.xpose.msra.mxu0 0
        %705 = vmatprep.subr.bf16.mxu0 0
        %706 = vmatpush1.bf16.xpose.msra.mxu0 0
        %707 = vmatprep.subr.bf16.mxu0 0
        %708 = vmatpush1.bf16.xpose.msra.mxu0 0
        %709 = vmatprep.subr.bf16.mxu0 0
        %710 = vmatpush1.bf16.xpose.msra.mxu0 0
        %711 = vmatprep.subr.bf16.mxu0 0
        %712 = vmatpush1.bf16.xpose.msra.mxu0 0
        %713 = vmatprep.subr.bf16.mxu0 0
        %714 = vmatpush1.bf16.xpose.msra.mxu0 0
        %715 = vmatprep.subr.bf16.mxu0 0
        %716 = vmatpush1.bf16.xpose.msra.mxu0 0
        %717 = vmatprep.subr.bf16.mxu0 0
        %718 = vmatpush1.bf16.xpose.msra.mxu0 0
        %719 = vmatprep.subr.bf16.mxu0 0
        %720 = vmatpush1.bf16.xpose.msra.mxu0 0
        %721 = vmatprep.subr.bf16.mxu0 0
        %722 = vmatpush1.bf16.xpose.msra.mxu0 0
        %723 = vmatprep.subr.bf16.mxu0 0
        %724 = vmatpush1.bf16.xpose.msra.mxu0 0
        %725 = vmatprep.mubr.bf16.mxu0 0
        %726 = vmatmul.mubr.bf16.gmra.mrb[0].mxu0 %v688
        %v727 = vpop.f32.mrb[0].mxu0
        %v728 = vadd.f32 0.0, %v727
        %v729 = vpop.f32.mrb[0].mxu0
        %v730 = vpop.f32.mrb[0].mxu0
        %v731 = vpop.f32.mrb[0].mxu0
        %732 = vdwg.mxu0
        %v733 = vsel %vm685, %v728, -1e+30
        %v734 = vsel %vm686, %v733, -inf
        %735 = vmax.xlane.f32.xlu0 %v734
        %v736 = vpop.xlane.xlu0 %735
        %v737 = vsub.f32 %v733, %v736
        %v738 = vmul.f32 %v737, 1.442695
        %v739 = vpow.pop %v738
        %v740 = vsel %vm686, %v739, 0.0
        %741 = vadd.xlane.f32.xlu0 %v740
        %v742 = vpop.xlane.xlu0 %741
        %v743 = vrcp.pop %v742
        %v744 = vmul.f32 %v739, %v743
        %v745 = vpack.c.bf16 %v744, %v744
        %v747 = vsel %vm686, %v745, 0
        %vm749 = vcmask 1043456
        %v751 = vsel %vm749, %v682, 0
        %753 = vmatprep.subr.bf16.mxu0 0
        %754 = vmatpush1.bf16.msra.mxu0 %v751
        %755 = vmatprep.subr.bf16.mxu0 0
        %756 = vmatpush1.bf16.msra.mxu0 0
        %757 = vmatprep.subr.bf16.mxu0 0
        %758 = vmatpush1.bf16.msra.mxu0 0
        %759 = vmatprep.subr.bf16.mxu0 0
        %760 = vmatpush1.bf16.msra.mxu0 0
        %761 = vmatprep.subr.bf16.mxu0 0
        %762 = vmatpush1.bf16.msra.mxu0 0
        %763 = vmatprep.subr.bf16.mxu0 0
        %764 = vmatpush1.bf16.msra.mxu0 0
        %765 = vmatprep.subr.bf16.mxu0 0
        %766 = vmatpush1.bf16.msra.mxu0 0
        %767 = vmatprep.subr.bf16.mxu0 0
        %768 = vmatpush1.bf16.msra.mxu0 0
        %769 = vmatprep.subr.bf16.mxu0 0
        %770 = vmatpush1.bf16.msra.mxu0 0
        %771 = vmatprep.subr.bf16.mxu0 0
        %772 = vmatpush1.bf16.msra.mxu0 0
        %773 = vmatprep.subr.bf16.mxu0 0
        %774 = vmatpush1.bf16.msra.mxu0 0
        %775 = vmatprep.subr.bf16.mxu0 0
        %776 = vmatpush1.bf16.msra.mxu0 0
        %777 = vmatprep.subr.bf16.mxu0 0
        %778 = vmatpush1.bf16.msra.mxu0 0
        %779 = vmatprep.subr.bf16.mxu0 0
        %780 = vmatpush1.bf16.msra.mxu0 0
        %781 = vmatprep.subr.bf16.mxu0 0
        %782 = vmatpush1.bf16.msra.mxu0 0
        %783 = vmatprep.subr.bf16.mxu0 0
        %784 = vmatpush1.bf16.msra.mxu0 0
        %785 = vmatprep.mubr.bf16.mxu0 0
        %786 = vmatmul.mubr.bf16.gmra.mrb[0].mxu0 %v747
        %v787 = vpop.f32.mrb[0].mxu0
        %v788 = vadd.f32 0.0, %v787
        %v789 = vpop.f32.mrb[0].mxu0
        %v790 = vpop.f32.mrb[0].mxu0
        %v791 = vpop.f32.mrb[0].mxu0
        %792 = vdwg.mxu0
        %v793 = vpack.c.bf16 %v788, %v788
        %v794 = vld [vmem:[%s4] sm:$0xf]
        %796 = vrot.lane.b32.xlu0 %v663, 120
        %v797 = vpop.permute.xlu0 %796
        %799 = vrot.lane.b32.xlu0 %v681, 120
        %v800 = vpop.permute.xlu0 %799
        %v802 = vsel %vm686, %v797, 0
        %v805 = vsel %vm686, %v800, 0
        %807 = vmatprep.subr.bf16.mxu0 0
        %808 = vmatpush1.bf16.xpose.msra.mxu0 %v805
        %809 = vmatprep.subr.bf16.mxu0 0
        %810 = vmatpush1.bf16.xpose.msra.mxu0 0
        %811 = vmatprep.subr.bf16.mxu0 0
        %812 = vmatpush1.bf16.xpose.msra.mxu0 0
        %813 = vmatprep.subr.bf16.mxu0 0
        %814 = vmatpush1.bf16.xpose.msra.mxu0 0
        %815 = vmatprep.subr.bf16.mxu0 0
        %816 = vmatpush1.bf16.xpose.msra.mxu0 0
        %817 = vmatprep.subr.bf16.mxu0 0
        %818 = vmatpush1.bf16.xpose.msra.mxu0 0
        %819 = vmatprep.subr.bf16.mxu0 0
        %820 = vmatpush1.bf16.xpose.msra.mxu0 0
        %821 = vmatprep.subr.bf16.mxu0 0
        %822 = vmatpush1.bf16.xpose.msra.mxu0 0
        %823 = vmatprep.subr.bf16.mxu0 0
        %824 = vmatpush1.bf16.xpose.msra.mxu0 0
        %825 = vmatprep.subr.bf16.mxu0 0
        %826 = vmatpush1.bf16.xpose.msra.mxu0 0
        %827 = vmatprep.subr.bf16.mxu0 0
        %828 = vmatpush1.bf16.xpose.msra.mxu0 0
        %829 = vmatprep.subr.bf16.mxu0 0
        %830 = vmatpush1.bf16.xpose.msra.mxu0 0
        %831 = vmatprep.subr.bf16.mxu0 0
        %832 = vmatpush1.bf16.xpose.msra.mxu0 0
        %833 = vmatprep.subr.bf16.mxu0 0
        %834 = vmatpush1.bf16.xpose.msra.mxu0 0
        %835 = vmatprep.subr.bf16.mxu0 0
        %836 = vmatpush1.bf16.xpose.msra.mxu0 0
        %837 = vmatprep.subr.bf16.mxu0 0
        %838 = vmatpush1.bf16.xpose.msra.mxu0 0
        %839 = vmatprep.mubr.bf16.mxu0 0
        %840 = vmatmul.mubr.bf16.gmra.mrb[0].mxu0 %v802
        %v841 = vpop.f32.mrb[0].mxu0
        %v842 = vadd.f32 0.0, %v841
        %v843 = vpop.f32.mrb[0].mxu0
        %v844 = vpop.f32.mrb[0].mxu0
        %v845 = vpop.f32.mrb[0].mxu0
        %846 = vdwg.mxu0
        %v847 = vsel %vm685, %v842, -1e+30
        %v848 = vsel %vm686, %v847, -inf
        %849 = vmax.xlane.f32.xlu0 %v848
        %v850 = vpop.xlane.xlu0 %849
        %v851 = vsub.f32 %v847, %v850
        %v852 = vmul.f32 %v851, 1.442695
        %v853 = vpow.pop %v852
        %v854 = vsel %vm686, %v853, 0.0
        %855 = vadd.xlane.f32.xlu0 %v854
        %v856 = vpop.xlane.xlu0 %855
        %v857 = vrcp.pop %v856
        %v858 = vmul.f32 %v853, %v857
        %v859 = vpack.c.bf16 %v858, %v858
        %861 = vrot.lane.b32.xlu0 %v682, 120
        %v862 = vpop.permute.xlu0 %861
        %v864 = vsel %vm686, %v859, 0
        %v867 = vsel %vm749, %v862, 0
        %869 = vmatprep.subr.bf16.mxu0 0
        %870 = vmatpush1.bf16.msra.mxu0 %v867
        %871 = vmatprep.subr.bf16.mxu0 0
        %872 = vmatpush1.bf16.msra.mxu0 0
        %873 = vmatprep.subr.bf16.mxu0 0
        %874 = vmatpush1.bf16.msra.mxu0 0
        %875 = vmatprep.subr.bf16.mxu0 0
        %876 = vmatpush1.bf16.msra.mxu0 0
        %877 = vmatprep.subr.bf16.mxu0 0
        %878 = vmatpush1.bf16.msra.mxu0 0
        %879 = vmatprep.subr.bf16.mxu0 0
        %880 = vmatpush1.bf16.msra.mxu0 0
        %881 = vmatprep.subr.bf16.mxu0 0
        %882 = vmatpush1.bf16.msra.mxu0 0
        %883 = vmatprep.subr.bf16.mxu0 0
        %884 = vmatpush1.bf16.msra.mxu0 0
        %885 = vmatprep.subr.bf16.mxu0 0
        %886 = vmatpush1.bf16.msra.mxu0 0
        %887 = vmatprep.subr.bf16.mxu0 0
        %888 = vmatpush1.bf16.msra.mxu0 0
        %889 = vmatprep.subr.bf16.mxu0 0
        %890 = vmatpush1.bf16.msra.mxu0 0
        %891 = vmatprep.subr.bf16.mxu0 0
        %892 = vmatpush1.bf16.msra.mxu0 0
        %893 = vmatprep.subr.bf16.mxu0 0
        %894 = vmatpush1.bf16.msra.mxu0 0
        %895 = vmatprep.subr.bf16.mxu0 0
        %896 = vmatpush1.bf16.msra.mxu0 0
        %897 = vmatprep.subr.bf16.mxu0 0
        %898 = vmatpush1.bf16.msra.mxu0 0
        %899 = vmatprep.subr.bf16.mxu0 0
        %900 = vmatpush1.bf16.msra.mxu0 0
        %901 = vmatprep.mubr.bf16.mxu0 0
        %902 = vmatmul.mubr.bf16.gmra.mrb[0].mxu0 %v864
        %v903 = vpop.f32.mrb[0].mxu0
        %v904 = vadd.f32 0.0, %v903
        %v905 = vpop.f32.mrb[0].mxu0
        %v906 = vpop.f32.mrb[0].mxu0
        %v907 = vpop.f32.mrb[0].mxu0
        %908 = vdwg.mxu0
        %v909 = vpack.c.bf16 %v904, %v904
        %v910 = vld [vmem:[%s4 + $0x4] sm:$0xf]
        %v912 = vsel %vm686, %v909, 0
        %v915 = vsel %vm749, %v910, 0
        %917 = vmatprep.subr.bf16.mxu0 0
        %918 = vmatpush1.bf16.msra.mxu0 %v915
        %919 = vmatprep.subr.bf16.mxu0 0
        %920 = vmatpush1.bf16.msra.mxu0 0
        %921 = vmatprep.subr.bf16.mxu0 0
        %922 = vmatpush1.bf16.msra.mxu0 0
        %923 = vmatprep.subr.bf16.mxu0 0
        %924 = vmatpush1.bf16.msra.mxu0 0
        %925 = vmatprep.subr.bf16.mxu0 0
        %926 = vmatpush1.bf16.msra.mxu0 0
        %927 = vmatprep.subr.bf16.mxu0 0
        %928 = vmatpush1.bf16.msra.mxu0 0
        %929 = vmatprep.subr.bf16.mxu0 0
        %930 = vmatpush1.bf16.msra.mxu0 0
        %931 = vmatprep.subr.bf16.mxu0 0
        %932 = vmatpush1.bf16.msra.mxu0 0
        %933 = vmatprep.subr.bf16.mxu0 0
        %934 = vmatpush1.bf16.msra.mxu0 0
        %935 = vmatprep.subr.bf16.mxu0 0
        %936 = vmatpush1.bf16.msra.mxu0 0
        %937 = vmatprep.subr.bf16.mxu0 0
        %938 = vmatpush1.bf16.msra.mxu0 0
        %939 = vmatprep.subr.bf16.mxu0 0
        %940 = vmatpush1.bf16.msra.mxu0 0
        %941 = vmatprep.subr.bf16.mxu0 0
        %942 = vmatpush1.bf16.msra.mxu0 0
        %943 = vmatprep.subr.bf16.mxu0 0
        %944 = vmatpush1.bf16.msra.mxu0 0
        %945 = vmatprep.subr.bf16.mxu0 0
        %946 = vmatpush1.bf16.msra.mxu0 0
        %947 = vmatprep.subr.bf16.mxu0 0
        %948 = vmatpush1.bf16.msra.mxu0 0
        %949 = vmatprep.mubr.bf16.mxu0 0
        %950 = vmatmul.mubr.bf16.gmra.mrb[0].mxu0 %v912
        %v951 = vpop.f32.mrb[0].mxu0
        %v952 = vadd.f32 0.0, %v951
        %v953 = vpop.f32.mrb[0].mxu0
        %v954 = vpop.f32.mrb[0].mxu0
        %v955 = vpop.f32.mrb[0].mxu0
        %956 = vdwg.mxu0
        %v958 = vsel %vm686, %v793, 0
        %v961 = vsel %vm749, %v794, 0
        %963 = vmatprep.subr.bf16.mxu0 0
        %964 = vmatpush1.bf16.msra.mxu0 %v961
        %965 = vmatprep.subr.bf16.mxu0 0
        %966 = vmatpush1.bf16.msra.mxu0 0
        %967 = vmatprep.subr.bf16.mxu0 0
        %968 = vmatpush1.bf16.msra.mxu0 0
        %969 = vmatprep.subr.bf16.mxu0 0
        %970 = vmatpush1.bf16.msra.mxu0 0
        %971 = vmatprep.subr.bf16.mxu0 0
        %972 = vmatpush1.bf16.msra.mxu0 0
        %973 = vmatprep.subr.bf16.mxu0 0
        %974 = vmatpush1.bf16.msra.mxu0 0
        %975 = vmatprep.subr.bf16.mxu0 0
        %976 = vmatpush1.bf16.msra.mxu0 0
        %977 = vmatprep.subr.bf16.mxu0 0
        %978 = vmatpush1.bf16.msra.mxu0 0
        %979 = vmatprep.subr.bf16.mxu0 0
        %980 = vmatpush1.bf16.msra.mxu0 0
        %981 = vmatprep.subr.bf16.mxu0 0
        %982 = vmatpush1.bf16.msra.mxu0 0
        %983 = vmatprep.subr.bf16.mxu0 0
        %984 = vmatpush1.bf16.msra.mxu0 0
        %985 = vmatprep.subr.bf16.mxu0 0
        %986 = vmatpush1.bf16.msra.mxu0 0
        %987 = vmatprep.subr.bf16.mxu0 0
        %988 = vmatpush1.bf16.msra.mxu0 0
        %989 = vmatprep.subr.bf16.mxu0 0
        %990 = vmatpush1.bf16.msra.mxu0 0
        %991 = vmatprep.subr.bf16.mxu0 0
        %992 = vmatpush1.bf16.msra.mxu0 0
        %993 = vmatprep.subr.bf16.mxu0 0
        %994 = vmatpush1.bf16.msra.mxu0 0
        %995 = vmatprep.mubr.bf16.mxu0 0
        %996 = vmatmul.mubr.bf16.gmra.mrb[0].mxu0 %v958
        %v997 = vpop.f32.mrb[0].mxu0
        %v998 = vadd.f32 %v952, %v997
        %v999 = vpop.f32.mrb[0].mxu0
        %v1000 = vpop.f32.mrb[0].mxu0
        %v1001 = vpop.f32.mrb[0].mxu0
        %1002 = vdwg.mxu0
        %1003 = vrot.lane.b32.xlu0 %v663, 112
        %v1004 = vpop.permute.xlu0 %1003
        %1005 = vrot.lane.b32.xlu0 %v681, 112
        %v1006 = vpop.permute.xlu0 %1005
        %v1008 = vsel %vm686, %v1004, 0
        %v1011 = vsel %vm686, %v1006, 0
        %1013 = vmatprep.subr.bf16.mxu0 0
        %1014 = vmatpush1.bf16.xpose.msra.mxu0 %v1011
        %1015 = vmatprep.subr.bf16.mxu0 0
        %1016 = vmatpush1.bf16.xpose.msra.mxu0 0
        %1017 = vmatprep.subr.bf16.mxu0 0
        %1018 = vmatpush1.bf16.xpose.msra.mxu0 0
        %1019 = vmatprep.subr.bf16.mxu0 0
        %1020 = vmatpush1.bf16.xpose.msra.mxu0 0
        %1021 = vmatprep.subr.bf16.mxu0 0
        %1022 = vmatpush1.bf16.xpose.msra.mxu0 0
        %1023 = vmatprep.subr.bf16.mxu0 0
        %1024 = vmatpush1.bf16.xpose.msra.mxu0 0
        %1025 = vmatprep.subr.bf16.mxu0 0
        %1026 = vmatpush1.bf16.xpose.msra.mxu0 0
        %1027 = vmatprep.subr.bf16.mxu0 0
        %1028 = vmatpush1.bf16.xpose.msra.mxu0 0
        %1029 = vmatprep.subr.bf16.mxu0 0
        %1030 = vmatpush1.bf16.xpose.msra.mxu0 0
        %1031 = vmatprep.subr.bf16.mxu0 0
        %1032 = vmatpush1.bf16.xpose.msra.mxu0 0
        %1033 = vmatprep.subr.bf16.mxu0 0
        %1034 = vmatpush1.bf16.xpose.msra.mxu0 0
        %1035 = vmatprep.subr.bf16.mxu0 0
        %1036 = vmatpush1.bf16.xpose.msra.mxu0 0
        %1037 = vmatprep.subr.bf16.mxu0 0
        %1038 = vmatpush1.bf16.xpose.msra.mxu0 0
        %1039 = vmatprep.subr.bf16.mxu0 0
        %1040 = vmatpush1.bf16.xpose.msra.mxu0 0
        %1041 = vmatprep.subr.bf16.mxu0 0
        %1042 = vmatpush1.bf16.xpose.msra.mxu0 0
        %1043 = vmatprep.subr.bf16.mxu0 0
        %1044 = vmatpush1.bf16.xpose.msra.mxu0 0
        %1045 = vmatprep.mubr.bf16.mxu0 0
        %1046 = vmatmul.mubr.bf16.gmra.mrb[0].mxu0 %v1008
        %v1047 = vpop.f32.mrb[0].mxu0
        %v1048 = vadd.f32 0.0, %v1047
        %v1049 = vpop.f32.mrb[0].mxu0
        %v1050 = vpop.f32.mrb[0].mxu0
        %v1051 = vpop.f32.mrb[0].mxu0
        %1052 = vdwg.mxu0
        %v1053 = vsel %vm685, %v1048, -1e+30
        %v1054 = vsel %vm686, %v1053, -inf
        %1055 = vmax.xlane.f32.xlu0 %v1054
        %v1056 = vpop.xlane.xlu0 %1055
        %v1057 = vsub.f32 %v1053, %v1056
        %v1058 = vmul.f32 %v1057, 1.442695
        %v1059 = vpow.pop %v1058
        %v1060 = vsel %vm686, %v1059, 0.0
        %1061 = vadd.xlane.f32.xlu0 %v1060
        %v1062 = vpop.xlane.xlu0 %1061
        %v1063 = vrcp.pop %v1062
        %v1064 = vmul.f32 %v1059, %v1063
        %v1065 = vpack.c.bf16 %v1064, %v1064
        %1066 = vrot.lane.b32.xlu0 %v682, 112
        %v1067 = vpop.permute.xlu0 %1066
        %v1069 = vsel %vm686, %v1065, 0
        %v1072 = vsel %vm749, %v1067, 0
        %1074 = vmatprep.subr.bf16.mxu0 0
        %1075 = vmatpush1.bf16.msra.mxu0 %v1072
        %1076 = vmatprep.subr.bf16.mxu0 0
        %1077 = vmatpush1.bf16.msra.mxu0 0
        %1078 = vmatprep.subr.bf16.mxu0 0
        %1079 = vmatpush1.bf16.msra.mxu0 0
        %1080 = vmatprep.subr.bf16.mxu0 0
        %1081 = vmatpush1.bf16.msra.mxu0 0
        %1082 = vmatprep.subr.bf16.mxu0 0
        %1083 = vmatpush1.bf16.msra.mxu0 0
        %1084 = vmatprep.subr.bf16.mxu0 0
        %1085 = vmatpush1.bf16.msra.mxu0 0
        %1086 = vmatprep.subr.bf16.mxu0 0
        %1087 = vmatpush1.bf16.msra.mxu0 0
        %1088 = vmatprep.subr.bf16.mxu0 0
        %1089 = vmatpush1.bf16.msra.mxu0 0
        %1090 = vmatprep.subr.bf16.mxu0 0
        %1091 = vmatpush1.bf16.msra.mxu0 0
        %1092 = vmatprep.subr.bf16.mxu0 0
        %1093 = vmatpush1.bf16.msra.mxu0 0
        %1094 = vmatprep.subr.bf16.mxu0 0
        %1095 = vmatpush1.bf16.msra.mxu0 0
        %1096 = vmatprep.subr.bf16.mxu0 0
        %1097 = vmatpush1.bf16.msra.mxu0 0
        %1098 = vmatprep.subr.bf16.mxu0 0
        %1099 = vmatpush1.bf16.msra.mxu0 0
        %1100 = vmatprep.subr.bf16.mxu0 0
        %1101 = vmatpush1.bf16.msra.mxu0 0
        %1102 = vmatprep.subr.bf16.mxu0 0
        %1103 = vmatpush1.bf16.msra.mxu0 0
        %1104 = vmatprep.subr.bf16.mxu0 0
        %1105 = vmatpush1.bf16.msra.mxu0 0
        %1106 = vmatprep.mubr.bf16.mxu0 0
        %1107 = vmatmul.mubr.bf16.gmra.mrb[0].mxu0 %v1069
        %v1108 = vpop.f32.mrb[0].mxu0
        %v1109 = vadd.f32 0.0, %v1108
        %v1110 = vpop.f32.mrb[0].mxu0
        %v1111 = vpop.f32.mrb[0].mxu0
        %v1112 = vpop.f32.mrb[0].mxu0
        %1113 = vdwg.mxu0
        %v1114 = vpack.c.bf16 %v1109, %v1109
        %v1115 = vld [vmem:[%s4 + $0x8] sm:$0xf]
        %v1117 = vsel %vm686, %v1114, 0
        %v1120 = vsel %vm749, %v1115, 0
        %1122 = vmatprep.subr.bf16.mxu0 0
        %1123 = vmatpush1.bf16.msra.mxu0 %v1120
        %1124 = vmatprep.subr.bf16.mxu0 0
        %1125 = vmatpush1.bf16.msra.mxu0 0
        %1126 = vmatprep.subr.bf16.mxu0 0
        %1127 = vmatpush1.bf16.msra.mxu0 0
        %1128 = vmatprep.subr.bf16.mxu0 0
        %1129 = vmatpush1.bf16.msra.mxu0 0
        %1130 = vmatprep.subr.bf16.mxu0 0
        %1131 = vmatpush1.bf16.msra.mxu0 0
        %1132 = vmatprep.subr.bf16.mxu0 0
        %1133 = vmatpush1.bf16.msra.mxu0 0
        %1134 = vmatprep.subr.bf16.mxu0 0
        %1135 = vmatpush1.bf16.msra.mxu0 0
        %1136 = vmatprep.subr.bf16.mxu0 0
        %1137 = vmatpush1.bf16.msra.mxu0 0
        %1138 = vmatprep.subr.bf16.mxu0 0
        %1139 = vmatpush1.bf16.msra.mxu0 0
        %1140 = vmatprep.subr.bf16.mxu0 0
        %1141 = vmatpush1.bf16.msra.mxu0 0
        %1142 = vmatprep.subr.bf16.mxu0 0
        %1143 = vmatpush1.bf16.msra.mxu0 0
        %1144 = vmatprep.subr.bf16.mxu0 0
        %1145 = vmatpush1.bf16.msra.mxu0 0
        %1146 = vmatprep.subr.bf16.mxu0 0
        %1147 = vmatpush1.bf16.msra.mxu0 0
        %1148 = vmatprep.subr.bf16.mxu0 0
        %1149 = vmatpush1.bf16.msra.mxu0 0
        %1150 = vmatprep.subr.bf16.mxu0 0
        %1151 = vmatpush1.bf16.msra.mxu0 0
        %1152 = vmatprep.subr.bf16.mxu0 0
        %1153 = vmatpush1.bf16.msra.mxu0 0
        %1154 = vmatprep.mubr.bf16.mxu0 0
        %1155 = vmatmul.mubr.bf16.gmra.mrb[0].mxu0 %v1117
        %v1156 = vpop.f32.mrb[0].mxu0
        %v1157 = vadd.f32 0.0, %v1156
        %v1158 = vpop.f32.mrb[0].mxu0
        %v1159 = vpop.f32.mrb[0].mxu0
        %v1160 = vpop.f32.mrb[0].mxu0
        %1161 = vdwg.mxu0
        %v1162 = vadd.f32 %v998, %v1157
        %1163 = vrot.lane.b32.xlu0 %v663, 104
        %v1164 = vpop.permute.xlu0 %1163
        %1165 = vrot.lane.b32.xlu0 %v681, 104
        %v1166 = vpop.permute.xlu0 %1165
        %v1168 = vsel %vm686, %v1164, 0
        %v1171 = vsel %vm686, %v1166, 0
        %1173 = vmatprep.subr.bf16.mxu0 0
        %1174 = vmatpush1.bf16.xpose.msra.mxu0 %v1171
        %1175 = vmatprep.subr.bf16.mxu0 0
        %1176 = vmatpush1.bf16.xpose.msra.mxu0 0
        %1177 = vmatprep.subr.bf16.mxu0 0
        %1178 = vmatpush1.bf16.xpose.msra.mxu0 0
        %1179 = vmatprep.subr.bf16.mxu0 0
        %1180 = vmatpush1.bf16.xpose.msra.mxu0 0
        %1181 = vmatprep.subr.bf16.mxu0 0
        %1182 = vmatpush1.bf16.xpose.msra.mxu0 0
        %1183 = vmatprep.subr.bf16.mxu0 0
        %1184 = vmatpush1.bf16.xpose.msra.mxu0 0
        %1185 = vmatprep.subr.bf16.mxu0 0
        %1186 = vmatpush1.bf16.xpose.msra.mxu0 0
        %1187 = vmatprep.subr.bf16.mxu0 0
        %1188 = vmatpush1.bf16.xpose.msra.mxu0 0
        %1189 = vmatprep.subr.bf16.mxu0 0
        %1190 = vmatpush1.bf16.xpose.msra.mxu0 0
        %1191 = vmatprep.subr.bf16.mxu0 0
        %1192 = vmatpush1.bf16.xpose.msra.mxu0 0
        %1193 = vmatprep.subr.bf16.mxu0 0
        %1194 = vmatpush1.bf16.xpose.msra.mxu0 0
        %1195 = vmatprep.subr.bf16.mxu0 0
        %1196 = vmatpush1.bf16.xpose.msra.mxu0 0
        %1197 = vmatprep.subr.bf16.mxu0 0
        %1198 = vmatpush1.bf16.xpose.msra.mxu0 0
        %1199 = vmatprep.subr.bf16.mxu0 0
        %1200 = vmatpush1.bf16.xpose.msra.mxu0 0
        %1201 = vmatprep.subr.bf16.mxu0 0
        %1202 = vmatpush1.bf16.xpose.msra.mxu0 0
        %1203 = vmatprep.subr.bf16.mxu0 0
        %1204 = vmatpush1.bf16.xpose.msra.mxu0 0
        %1205 = vmatprep.mubr.bf16.mxu0 0
        %1206 = vmatmul.mubr.bf16.gmra.mrb[0].mxu0 %v1168
        %v1207 = vpop.f32.mrb[0].mxu0
        %v1208 = vadd.f32 0.0, %v1207
        %v1209 = vpop.f32.mrb[0].mxu0
        %v1210 = vpop.f32.mrb[0].mxu0
        %v1211 = vpop.f32.mrb[0].mxu0
        %1212 = vdwg.mxu0
        %v1213 = vsel %vm685, %v1208, -1e+30
        %v1214 = vsel %vm686, %v1213, -inf
        %1215 = vmax.xlane.f32.xlu0 %v1214
        %v1216 = vpop.xlane.xlu0 %1215
        %v1217 = vsub.f32 %v1213, %v1216
        %v1218 = vmul.f32 %v1217, 1.442695
        %v1219 = vpow.pop %v1218
        %v1220 = vsel %vm686, %v1219, 0.0
        %1221 = vadd.xlane.f32.xlu0 %v1220
        %v1222 = vpop.xlane.xlu0 %1221
        %v1223 = vrcp.pop %v1222
        %v1224 = vmul.f32 %v1219, %v1223
        %v1225 = vpack.c.bf16 %v1224, %v1224
        %1226 = vrot.lane.b32.xlu0 %v682, 104
        %v1227 = vpop.permute.xlu0 %1226
        %v1229 = vsel %vm686, %v1225, 0
        %v1232 = vsel %vm749, %v1227, 0
        %1234 = vmatprep.subr.bf16.mxu0 0
        %1235 = vmatpush1.bf16.msra.mxu0 %v1232
        %1236 = vmatprep.subr.bf16.mxu0 0
        %1237 = vmatpush1.bf16.msra.mxu0 0
        %1238 = vmatprep.subr.bf16.mxu0 0
        %1239 = vmatpush1.bf16.msra.mxu0 0
        %1240 = vmatprep.subr.bf16.mxu0 0
        %1241 = vmatpush1.bf16.msra.mxu0 0
        %1242 = vmatprep.subr.bf16.mxu0 0
        %1243 = vmatpush1.bf16.msra.mxu0 0
        %1244 = vmatprep.subr.bf16.mxu0 0
        %1245 = vmatpush1.bf16.msra.mxu0 0
        %1246 = vmatprep.subr.bf16.mxu0 0
        %1247 = vmatpush1.bf16.msra.mxu0 0
        %1248 = vmatprep.subr.bf16.mxu0 0
        %1249 = vmatpush1.bf16.msra.mxu0 0
        %1250 = vmatprep.subr.bf16.mxu0 0
        %1251 = vmatpush1.bf16.msra.mxu0 0
        %1252 = vmatprep.subr.bf16.mxu0 0
        %1253 = vmatpush1.bf16.msra.mxu0 0
        %1254 = vmatprep.subr.bf16.mxu0 0
        %1255 = vmatpush1.bf16.msra.mxu0 0
        %1256 = vmatprep.subr.bf16.mxu0 0
        %1257 = vmatpush1.bf16.msra.mxu0 0
        %1258 = vmatprep.subr.bf16.mxu0 0
        %1259 = vmatpush1.bf16.msra.mxu0 0
        %1260 = vmatprep.subr.bf16.mxu0 0
        %1261 = vmatpush1.bf16.msra.mxu0 0
        %1262 = vmatprep.subr.bf16.mxu0 0
        %1263 = vmatpush1.bf16.msra.mxu0 0
        %1264 = vmatprep.subr.bf16.mxu0 0
        %1265 = vmatpush1.bf16.msra.mxu0 0
        %1266 = vmatprep.mubr.bf16.mxu0 0
        %1267 = vmatmul.mubr.bf16.gmra.mrb[0].mxu0 %v1229
        %v1268 = vpop.f32.mrb[0].mxu0
        %v1269 = vadd.f32 0.0, %v1268
        %v1270 = vpop.f32.mrb[0].mxu0
        %v1271 = vpop.f32.mrb[0].mxu0
        %v1272 = vpop.f32.mrb[0].mxu0
        %1273 = vdwg.mxu0
        %v1274 = vpack.c.bf16 %v1269, %v1269
        %v1275 = vld [vmem:[%s4 + $0xc] sm:$0xf]
        %v1277 = vsel %vm686, %v1274, 0
        %v1280 = vsel %vm749, %v1275, 0
        %1282 = vmatprep.subr.bf16.mxu0 0
        %1283 = vmatpush1.bf16.msra.mxu0 %v1280
        %1284 = vmatprep.subr.bf16.mxu0 0
        %1285 = vmatpush1.bf16.msra.mxu0 0
        %1286 = vmatprep.subr.bf16.mxu0 0
        %1287 = vmatpush1.bf16.msra.mxu0 0
        %1288 = vmatprep.subr.bf16.mxu0 0
        %1289 = vmatpush1.bf16.msra.mxu0 0
        %1290 = vmatprep.subr.bf16.mxu0 0
        %1291 = vmatpush1.bf16.msra.mxu0 0
        %1292 = vmatprep.subr.bf16.mxu0 0
        %1293 = vmatpush1.bf16.msra.mxu0 0
        %1294 = vmatprep.subr.bf16.mxu0 0
        %1295 = vmatpush1.bf16.msra.mxu0 0
        %1296 = vmatprep.subr.bf16.mxu0 0
        %1297 = vmatpush1.bf16.msra.mxu0 0
        %1298 = vmatprep.subr.bf16.mxu0 0
        %1299 = vmatpush1.bf16.msra.mxu0 0
        %1300 = vmatprep.subr.bf16.mxu0 0
        %1301 = vmatpush1.bf16.msra.mxu0 0
        %1302 = vmatprep.subr.bf16.mxu0 0
        %1303 = vmatpush1.bf16.msra.mxu0 0
        %1304 = vmatprep.subr.bf16.mxu0 0
        %1305 = vmatpush1.bf16.msra.mxu0 0
        %1306 = vmatprep.subr.bf16.mxu0 0
        %1307 = vmatpush1.bf16.msra.mxu0 0
        %1308 = vmatprep.subr.bf16.mxu0 0
        %1309 = vmatpush1.bf16.msra.mxu0 0
        %1310 = vmatprep.subr.bf16.mxu0 0
        %1311 = vmatpush1.bf16.msra.mxu0 0
        %1312 = vmatprep.subr.bf16.mxu0 0
        %1313 = vmatpush1.bf16.msra.mxu0 0
        %1314 = vmatprep.mubr.bf16.mxu0 0
        %1315 = vmatmul.mubr.bf16.gmra.mrb[0].mxu0 %v1277
        %v1316 = vpop.f32.mrb[0].mxu0
        %v1317 = vadd.f32 0.0, %v1316
        %v1318 = vpop.f32.mrb[0].mxu0
        %v1319 = vpop.f32.mrb[0].mxu0
        %v1320 = vpop.f32.mrb[0].mxu0
        %1321 = vdwg.mxu0
        %v1322 = vadd.f32 %v1162, %v1317
        %v1323 = vadd.f32 %v437, %v1322
        %v1324 = vmul.f32 %v1323, %v1323
        %v1325 = vsel %vm439, %v1324, 0.0
        %1326 = vadd.xlane.f32.xlu0 %v1325
        %v1327 = vpop.xlane.xlu0 %1326
        %v1328 = vmul.f32 %v1327, %v443
        %v1329 = vadd.f32 %v1328, 1e-06
        %v1330 = vrsqrt.pop %v1329
        %v1331 = vmul.f32 %v1323, %v1330
        %v1332 = vld [vmem:[%s6] sm:$0x1]
        %v1334 = vlaneseq
        %v1335 = vshrl.u32 %v1334, 7
        %v1336 = vsub.s32 0, %v1335
        %v1337 = vrot.slane %v1332, %v1336
        %v1339 = vmul.f32 %v1331, %v1337
        %v1340 = vpack.c.bf16 %v1339, %v1339
        %v1341 = vld [vmem:[%s7] sm:$0xf]
        %v1342 = vld [vmem:[%s7 + $0x4] sm:$0xf]
        %v1343 = vld [vmem:[%s7 + $0x8] sm:$0xf]
        %v1344 = vld [vmem:[%s7 + $0xc] sm:$0xf]
        %v1349 = vunpack.c.l.b16 %v1341
        %v1350 = vunpack.c.l.b16 %v1342
        %v1351 = vunpack.c.l.b16 %v1343
        %v1352 = vunpack.c.l.b16 %v1344
        %v1353 = vpack.c.b16 %v1350, %v1349
        %v1354 = vpack.c.b16 %v1352, %v1351
        %v1358 = vsel %vm439, %v1340, 0
        %1360 = vmatprep.subr.bf16.mxu0 0
        %1361 = vmatpush1.bf16.msra.mxu0 %v1353
        %1362 = vmatprep.subr.bf16.mxu0 0
        %1363 = vmatpush1.bf16.msra.mxu0 %v1354
        %1364 = vmatprep.subr.bf16.mxu0 0
        %1365 = vmatpush1.bf16.msra.mxu0 0
        %1366 = vmatprep.subr.bf16.mxu0 0
        %1367 = vmatpush1.bf16.msra.mxu0 0
        %1368 = vmatprep.subr.bf16.mxu0 0
        %1369 = vmatpush1.bf16.msra.mxu0 0
        %1370 = vmatprep.subr.bf16.mxu0 0
        %1371 = vmatpush1.bf16.msra.mxu0 0
        %1372 = vmatprep.subr.bf16.mxu0 0
        %1373 = vmatpush1.bf16.msra.mxu0 0
        %1374 = vmatprep.subr.bf16.mxu0 0
        %1375 = vmatpush1.bf16.msra.mxu0 0
        %1376 = vmatprep.subr.bf16.mxu0 0
        %1377 = vmatpush1.bf16.msra.mxu0 0
        %1378 = vmatprep.subr.bf16.mxu0 0
        %1379 = vmatpush1.bf16.msra.mxu0 0
        %1380 = vmatprep.subr.bf16.mxu0 0
        %1381 = vmatpush1.bf16.msra.mxu0 0
        %1382 = vmatprep.subr.bf16.mxu0 0
        %1383 = vmatpush1.bf16.msra.mxu0 0
        %1384 = vmatprep.subr.bf16.mxu0 0
        %1385 = vmatpush1.bf16.msra.mxu0 0
        %1386 = vmatprep.subr.bf16.mxu0 0
        %1387 = vmatpush1.bf16.msra.mxu0 0
        %1388 = vmatprep.subr.bf16.mxu0 0
        %1389 = vmatpush1.bf16.msra.mxu0 0
        %1390 = vmatprep.subr.bf16.mxu0 0
        %1391 = vmatpush1.bf16.msra.mxu0 0
        %1392 = vmatprep.mubr.bf16.mxu0 0
        %1393 = vmatmul.mubr.bf16.gmra.mrb[0].mxu0 %v1358
        %v1394 = vpop.f32.mrb[0].mxu0
        %v1395 = vadd.f32 0.0, %v1394
        %v1396 = vpop.f32.mrb[0].mxu0
        %v1397 = vpop.f32.mrb[0].mxu0
        %v1398 = vpop.f32.mrb[0].mxu0
        %1399 = vdwg.mxu0
        %v1400 = vld [vmem:[%s8] sm:$0xf]
        %v1401 = vld [vmem:[%s8 + $0x4] sm:$0xf]
        %v1402 = vld [vmem:[%s8 + $0x8] sm:$0xf]
        %v1403 = vld [vmem:[%s8 + $0xc] sm:$0xf]
        %v1408 = vunpack.c.l.b16 %v1400
        %v1409 = vunpack.c.l.b16 %v1401
        %v1410 = vunpack.c.l.b16 %v1402
        %v1411 = vunpack.c.l.b16 %v1403
        %v1412 = vpack.c.b16 %v1409, %v1408
        %v1413 = vpack.c.b16 %v1411, %v1410
        %1416 = vmatprep.subr.bf16.mxu0 0
        %1417 = vmatpush1.bf16.msra.mxu0 %v1412
        %1418 = vmatprep.subr.bf16.mxu0 0
        %1419 = vmatpush1.bf16.msra.mxu0 %v1413
        %1420 = vmatprep.subr.bf16.mxu0 0
        %1421 = vmatpush1.bf16.msra.mxu0 0
        %1422 = vmatprep.subr.bf16.mxu0 0
        %1423 = vmatpush1.bf16.msra.mxu0 0
        %1424 = vmatprep.subr.bf16.mxu0 0
        %1425 = vmatpush1.bf16.msra.mxu0 0
        %1426 = vmatprep.subr.bf16.mxu0 0
        %1427 = vmatpush1.bf16.msra.mxu0 0
        %1428 = vmatprep.subr.bf16.mxu0 0
        %1429 = vmatpush1.bf16.msra.mxu0 0
        %1430 = vmatprep.subr.bf16.mxu0 0
        %1431 = vmatpush1.bf16.msra.mxu0 0
        %1432 = vmatprep.subr.bf16.mxu0 0
        %1433 = vmatpush1.bf16.msra.mxu0 0
        %1434 = vmatprep.subr.bf16.mxu0 0
        %1435 = vmatpush1.bf16.msra.mxu0 0
        %1436 = vmatprep.subr.bf16.mxu0 0
        %1437 = vmatpush1.bf16.msra.mxu0 0
        %1438 = vmatprep.subr.bf16.mxu0 0
        %1439 = vmatpush1.bf16.msra.mxu0 0
        %1440 = vmatprep.subr.bf16.mxu0 0
        %1441 = vmatpush1.bf16.msra.mxu0 0
        %1442 = vmatprep.subr.bf16.mxu0 0
        %1443 = vmatpush1.bf16.msra.mxu0 0
        %1444 = vmatprep.subr.bf16.mxu0 0
        %1445 = vmatpush1.bf16.msra.mxu0 0
        %1446 = vmatprep.subr.bf16.mxu0 0
        %1447 = vmatpush1.bf16.msra.mxu0 0
        %1448 = vmatprep.mubr.bf16.mxu0 0
        %1449 = vmatmul.mubr.bf16.gmra.mrb[0].mxu0 %v1358
        %v1450 = vpop.f32.mrb[0].mxu0
        %v1451 = vadd.f32 0.0, %v1450
        %v1452 = vpop.f32.mrb[0].mxu0
        %v1453 = vpop.f32.mrb[0].mxu0
        %v1454 = vpop.f32.mrb[0].mxu0
        %1455 = vdwg.mxu0
        %v1456 = vxor.u32 %v1395, 2147483648
        %v1457 = vmul.f32 %v1456, 1.442695
        %v1458 = vpow.pop %v1457
        %v1459 = vadd.f32 %v1458, 1.0
        %v1460 = vrcp.pop %v1459
        %v1461 = vmul.f32 1.0, %v1460
        %v1462 = vmul.f32 %v1395, %v1461
        %v1463 = vmul.f32 %v1462, %v1451
        %v1464 = vpack.c.bf16 %v1463, %v1463
        %v1465 = vld [vmem:[%s9] sm:$0xf]
        %v1466 = vld [vmem:[%s9 + $0x4] sm:$0xf]
        %v1467 = vld [vmem:[%s9 + $0x8] sm:$0xf]
        %v1468 = vld [vmem:[%s9 + $0xc] sm:$0xf]
        %v1469 = vld [vmem:[%s9 + $0x10] sm:$0xf]
        %v1470 = vld [vmem:[%s9 + $0x14] sm:$0xf]
        %v1471 = vld [vmem:[%s9 + $0x18] sm:$0xf]
        %v1472 = vld [vmem:[%s9 + $0x1c] sm:$0xf]
        %v1481 = vunpack.c.l.b16 %v1465
        %v1482 = vunpack.c.l.b16 %v1466
        %v1483 = vunpack.c.l.b16 %v1467
        %v1484 = vunpack.c.l.b16 %v1468
        %v1485 = vunpack.c.l.b16 %v1469
        %v1486 = vunpack.c.l.b16 %v1470
        %v1487 = vunpack.c.l.b16 %v1471
        %v1488 = vunpack.c.l.b16 %v1472
        %v1489 = vpack.c.b16 %v1482, %v1481
        %v1490 = vpack.c.b16 %v1484, %v1483
        %v1491 = vpack.c.b16 %v1486, %v1485
        %v1492 = vpack.c.b16 %v1488, %v1487
        %vm1497 = vcmask 523264
        %v1499 = vsel %vm1497, %v1464, 0
        %1501 = vmatprep.subr.bf16.mxu0 0
        %1502 = vmatpush1.bf16.msra.mxu0 %v1489
        %1503 = vmatprep.subr.bf16.mxu0 0
        %1504 = vmatpush1.bf16.msra.mxu0 %v1490
        %1505 = vmatprep.subr.bf16.mxu0 0
        %1506 = vmatpush1.bf16.msra.mxu0 %v1491
        %1507 = vmatprep.subr.bf16.mxu0 0
        %1508 = vmatpush1.bf16.msra.mxu0 %v1492
        %1509 = vmatprep.subr.bf16.mxu0 0
        %1510 = vmatpush1.bf16.msra.mxu0 0
        %1511 = vmatprep.subr.bf16.mxu0 0
        %1512 = vmatpush1.bf16.msra.mxu0 0
        %1513 = vmatprep.subr.bf16.mxu0 0
        %1514 = vmatpush1.bf16.msra.mxu0 0
        %1515 = vmatprep.subr.bf16.mxu0 0
        %1516 = vmatpush1.bf16.msra.mxu0 0
        %1517 = vmatprep.subr.bf16.mxu0 0
        %1518 = vmatpush1.bf16.msra.mxu0 0
        %1519 = vmatprep.subr.bf16.mxu0 0
        %1520 = vmatpush1.bf16.msra.mxu0 0
        %1521 = vmatprep.subr.bf16.mxu0 0
        %1522 = vmatpush1.bf16.msra.mxu0 0
        %1523 = vmatprep.subr.bf16.mxu0 0
        %1524 = vmatpush1.bf16.msra.mxu0 0
        %1525 = vmatprep.subr.bf16.mxu0 0
        %1526 = vmatpush1.bf16.msra.mxu0 0
        %1527 = vmatprep.subr.bf16.mxu0 0
        %1528 = vmatpush1.bf16.msra.mxu0 0
        %1529 = vmatprep.subr.bf16.mxu0 0
        %1530 = vmatpush1.bf16.msra.mxu0 0
        %1531 = vmatprep.subr.bf16.mxu0 0
        %1532 = vmatpush1.bf16.msra.mxu0 0
        %1533 = vmatprep.mubr.bf16.mxu0 0
        %1534 = vmatmul.mubr.bf16.gmra.mrb[0].mxu0 %v1499
        %v1535 = vpop.f32.mrb[0].mxu0
        %v1536 = vadd.f32 0.0, %v1535
        %v1537 = vpop.f32.mrb[0].mxu0
        %v1538 = vpop.f32.mrb[0].mxu0
        %v1539 = vpop.f32.mrb[0].mxu0
        %1540 = vdwg.mxu0
        %v1541 = vadd.f32 %v1323, %v1536
        %v1542 = vld [vmem:[%s12] sm:$0x1]
        %v1544 = vlaneseq
        %v1545 = vshrl.u32 %v1544, 7
        %v1546 = vsub.s32 0, %v1545
        %v1547 = vrot.slane %v1542, %v1546
        %v1549 = vmul.f32 %v1541, %v1547
        %1550 = vst.msk [vmem:[%s431] sm:$0xff] %vm439, %v1549
        %s1551 = sand.u32 %s313, 1
        %s1552 = scalar_lea.sflag [#allocation3], %s1551
        %s1553 = sand.u32 %s313, 1
        %s1554 = smul.addr %s1553, 8
        %s1555 = scalar_lea.vmem [#allocation2], %s1554
        // Predicated region
        $region73: #{encoded_llama_decoder_layer.1} parent=71 // pred_check
          %p1556 = pneg %p323
        $region74: #{encoded_llama_decoder_layer.1} parent=71 // pred_check_branch
          %1558 = sbr.rel (%p1556) target = $region76
        $region75: #{encoded_llama_decoder_layer.1} parent=71 // pred_region
          %s1560 = ssub.s32 128, 128
          %1561 = vsyncadd %s1552, %s1560
          %s1562 = smul.addr %s27, 128
          %s1563 = scalar_lea.hbm %s13, %s1562
          %s1565 = sshll.u32 %s1555, 4
          %s1566 = int_to_ptr.vmem [resolvable:$true] %s1565
          %1568 = dma.vmem_to_hbm [thread:$0]  %s1566, 128, %s1563, %s1552
        $region76: #{encoded_llama_decoder_layer.1} parent=71 // pred_fallthru
          _
      $region72: #{encoded_llama_decoder_layer.1} parent=5 // pred_fallthru
        _
      %p1569 = scmp.le.s32.totalorder 2, %s22
      // Predicated region
      $region77: #{encoded_llama_decoder_layer.1} parent=5 // pred_check
        %p1570 = pneg %p1569
      $region78: #{encoded_llama_decoder_layer.1} parent=5 // pred_check_branch
        %1572 = sbr.rel (%p1570) target = $region80
      $region79: #{encoded_llama_decoder_layer.1} parent=5 // pred_region
        %s1573 = ssub.s32 %s22, 2
        // Predicated region
        $region81: #{encoded_llama_decoder_layer.1} parent=79 // pred_check
          %p1574 = pneg %p329
        $region82: #{encoded_llama_decoder_layer.1} parent=79 // pred_check_branch
          %1576 = sbr.rel (%p1574) target = $region84
        $region83: #{encoded_llama_decoder_layer.1} parent=79 // pred_region
          %s1577 = sand.u32 %s314, 1
          %s1578 = scalar_lea.sflag [#allocation3], %s1577
          %s1579 = sand.u32 %s314, 1
          %s1580 = smul.addr %s1579, 8
          %s1581 = scalar_lea.vmem [#allocation2], %s1580
          %1582 = dma.done %s1578, 128
        $region84: #{encoded_llama_decoder_layer.1} parent=79 // pred_fallthru
          _
      $region80: #{encoded_llama_decoder_layer.1} parent=5 // pred_fallthru
        _
    $region6: #{encoded_llama_decoder_layer.1} parent=1 // loop_footer
      %s26 = sadd.s32 1, %s22
    $region7: #{encoded_llama_decoder_layer.1} parent=1 // loop_footer_branch
      %21 = sbr.rel target = $region3
    $region8: #{encoded_llama_decoder_layer.1} parent=1 // loop_exit
      _
    %1583 = vsyncpa [#allocation3], 1
    %s1584 = scalar_lea.sflag [#allocation3], 1
    %1585 = vsyncpa %s1584, 1

</llo_original>
